<compile_context>
chip_gen: v7x
topology: tpu7x:2x2x1
jax: 0.10.0
libtpu: 0.0.40
codegen_flags: <defaults>
</compile_context>

<pallas_src>
import functools

import jax
import jax.numpy as jnp
from jax.experimental import pallas as pl
from jax.experimental.pallas import tpu as pltpu


def _attention_kernel(x_ref, wq_ref, wk_ref, wv_ref, wp_ref, bp_ref, o_ref,
                      *, batch_block, seq_len, num_heads, head_dim):
    # x_ref  : (R, C)   R = batch_block * seq_len rows of the input
    # wq_ref : (C, D)   q weight, pre-transposed, scale folded in  (bf16)
    # wk_ref : (C, D)   k weight, pre-transposed                   (bf16)
    # wv_ref : (C, D)   v weight, pre-transposed                   (bf16)
    # wp_ref : (D, C)   proj weight, pre-transposed                (bf16)
    # bp_ref : (1, C)   proj bias                                  (f32)
    # o_ref  : (R, C)
    Bb, N, H, Dh = batch_block, seq_len, num_heads, head_dim
    R = Bb * N
    C = o_ref.shape[-1]

    x = x_ref[...].astype(jnp.bfloat16)                               # (R, C)

    # Row projections on the MXU; q already carries the 1/sqrt(Dh) scale.
    q = jnp.dot(x, wq_ref[...], preferred_element_type=jnp.float32)   # (R, D)
    k = jnp.dot(x, wk_ref[...], preferred_element_type=jnp.float32)   # (R, D)
    v = jnp.dot(x, wv_ref[...], preferred_element_type=jnp.float32)   # (R, D)

    qb = q.astype(jnp.bfloat16)
    kb = k.astype(jnp.bfloat16)
    vb = v.astype(jnp.bfloat16)
    wp = wp_ref[...]                                                   # (D, C) bf16

    acc = jnp.zeros((R, C), jnp.float32)

    # Static (unrolled) loop over heads. The per-head output projection is
    # accumulated directly into `acc`, so heads are never concatenated or
    # reshaped across the Dh boundary.
    for h in range(H):
        lo = h * Dh
        qh = qb[:, lo:lo + Dh].reshape(Bb, N, Dh)
        kh = kb[:, lo:lo + Dh].reshape(Bb, N, Dh)
        vh = vb[:, lo:lo + Dh].reshape(Bb, N, Dh)

        # scores: (Bb, N, N), f32 accumulation
        s = jnp.einsum('bnd,bmd->bnm', qh, kh,
                       preferred_element_type=jnp.float32)

        # numerically stable softmax; division replaced by EUP approx reciprocal
        m = jnp.max(s, axis=-1, keepdims=True)
        p = jnp.exp(s - m)
        l = jnp.sum(p, axis=-1, keepdims=True)
        p = p * pl.reciprocal(l, approx=True)
        # attn_drop with p=0.0 is identity -> elided.

        pv = jnp.einsum('bnm,bmd->bnd', p.astype(jnp.bfloat16), vh,
                        preferred_element_type=jnp.float32)            # (Bb, N, Dh)

        acc = acc + jnp.dot(pv.reshape(R, Dh).astype(jnp.bfloat16),
                            wp[lo:lo + Dh, :],
                            preferred_element_type=jnp.float32)        # (R, C)

    y = acc + bp_ref[...]                                              # + bias
    # proj_drop with p=0.0 is identity -> elided.
    o_ref[...] = y.astype(o_ref.dtype)


def _pick_batch_block(B, N, target_rows=256):
    """Smallest divisor Bb of B such that Bb*N >= target_rows (else all of B)."""
    for bb in range(1, B + 1):
        if B % bb == 0 and bb * N >= target_rows:
            return bb
    return B


def attention_forward(x, w_qkv, w_proj, b_proj, *, num_heads):
    """x: (B, N, C); w_qkv: (3*D, C); w_proj: (C, D); b_proj: (C,) — nn.Linear layout."""
    B, N, C = x.shape
    all_head_dim = w_qkv.shape[0] // 3
    head_dim = all_head_dim // num_heads
    scale = head_dim ** (-0.5)

    # ---- one-time host-side parameter prep (outside the kernel) ----
    w_qkv_t = jnp.transpose(w_qkv)                                      # (C, 3*D)
    wq = (w_qkv_t[:, 0 * all_head_dim:1 * all_head_dim] * scale).astype(jnp.bfloat16)
    wk = w_qkv_t[:, 1 * all_head_dim:2 * all_head_dim].astype(jnp.bfloat16)
    wv = w_qkv_t[:, 2 * all_head_dim:3 * all_head_dim].astype(jnp.bfloat16)
    wp = jnp.transpose(w_proj).astype(jnp.bfloat16)                     # (D, C)
    bp = b_proj.reshape(1, C).astype(jnp.float32)

    # ---- several batch elements per grid step to amortize per-step overhead ----
    Bb = _pick_batch_block(B, N)
    R = Bb * N
    x2 = x.reshape(B * N, C)      # free metadata reshape on the host side

    kernel = functools.partial(_attention_kernel,
                               batch_block=Bb, seq_len=N,
                               num_heads=num_heads, head_dim=head_dim)

    out2 = pl.pallas_call(
        kernel,
        out_shape=jax.ShapeDtypeStruct((B * N, C), x.dtype),
        grid_spec=pltpu.PrefetchScalarGridSpec(
            num_scalar_prefetch=0,
            grid=(B // Bb,),
            in_specs=[
                pl.BlockSpec((R, C), lambda i: (i, 0)),                 # x rows
                pl.BlockSpec((C, all_head_dim), lambda i: (0, 0)),      # Wq^T (scaled)
                pl.BlockSpec((C, all_head_dim), lambda i: (0, 0)),      # Wk^T
                pl.BlockSpec((C, all_head_dim), lambda i: (0, 0)),      # Wv^T
                pl.BlockSpec((all_head_dim, C), lambda i: (0, 0)),      # Wproj^T
                pl.BlockSpec((1, C), lambda i: (0, 0)),                 # proj bias
            ],
            out_specs=pl.BlockSpec((R, C), lambda i: (i, 0)),
        ),
        compiler_params=pltpu.CompilerParams(
            dimension_semantics=("parallel",)),
    )(x2, wq, wk, wv, wp, bp)

    return out2.reshape(B, N, C)


def attention_reference(x, w_qkv, w_proj, b_proj, *, num_heads):
    """Pure-JAX f32 reference mirroring the PyTorch forward exactly."""
    B, N, C = x.shape
    all_head_dim = w_qkv.shape[0] // 3
    head_dim = all_head_dim // num_heads
    scale = head_dim ** (-0.5)

    qkv = x @ w_qkv.T                                        # (B, N, 3*D)
    qkv = qkv.reshape(B, N, 3, num_heads, head_dim)
    qkv = jnp.transpose(qkv, (2, 0, 3, 1, 4))                # (3, B, H, N, Dh)
    q, k, v = qkv[0], qkv[1], qkv[2]
    q = q * scale
    attn = q @ jnp.swapaxes(k, -2, -1)                       # (B, H, N, N)
    attn = jax.nn.softmax(attn, axis=-1)
    out = attn @ v                                           # (B, H, N, Dh)
    out = jnp.transpose(out, (0, 2, 1, 3)).reshape(B, N, all_head_dim)
    return out @ w_proj.T + b_proj


if __name__ == "__main__":
    # Small shapes consistent with the module: dim=C=32, num_heads=4, head_dim=8.
    B, N, C = 2, 8, 32
    num_heads = 4
    head_dim = C // num_heads
    all_head_dim = head_dim * num_heads

    key = jax.random.PRNGKey(0)
    kx, kqkv, kpw, kpb = jax.random.split(key, 4)

    x = jax.random.normal(kx, (B, N, C), dtype=jnp.float32)
    # nn.Linear-shaped parameters (out_features, in_features) / (out_features,)
    w_qkv = 0.1 * jax.random.normal(kqkv, (3 * all_head_dim, C), dtype=jnp.float32)
    w_proj = 0.1 * jax.random.normal(kpw, (C, all_head_dim), dtype=jnp.float32)
    b_proj = 0.1 * jax.random.normal(kpb, (C,), dtype=jnp.float32)

    out = attention_forward(x, w_qkv, w_proj, b_proj, num_heads=num_heads)
    out = jax.block_until_ready(out)

    ref = attention_reference(x, w_qkv, w_proj, b_proj, num_heads=num_heads)
    assert out.shape == (B, N, C)
    # Tolerance reflects bf16 matmul operands + approx reciprocal in the kernel
    # (reference is full f32).
    assert jnp.allclose(out, ref, atol=3e-2, rtol=3e-2), \
        f"max abs err {jnp.max(jnp.abs(out - ref))}"

    print("KERNEL_OK")
</pallas_src>

<mosaic_0001>
module attributes {stable_mosaic.version = 11 : i64} {
  func.func @_attention_kernel(%arg0: i32, %arg1: memref<16x32xf32, #tpu.memory_space<vmem>>, %arg2: memref<32x32xbf16, #tpu.memory_space<vmem>>, %arg3: memref<32x32xbf16, #tpu.memory_space<vmem>>, %arg4: memref<32x32xbf16, #tpu.memory_space<vmem>>, %arg5: memref<32x32xbf16, #tpu.memory_space<vmem>>, %arg6: memref<1x32xf32, #tpu.memory_space<vmem>>, %arg7: memref<16x32xf32, #tpu.memory_space<vmem>>) attributes {dimension_semantics = [#tpu.dimension_semantics<parallel>], iteration_bounds = array<i64: 1>, scalar_prefetch = 0 : i64, scratch_operands = 0 : i64, tpu.core_type = #tpu.core_type<tc>, window_params = [{transform_indices = @transform_0, window_bounds = array<i64: 16, 32>}, {pipeline_mode = #tpu.pipeline_mode<synchronous>, transform_indices = @transform_1, window_bounds = array<i64: 32, 32>}, {pipeline_mode = #tpu.pipeline_mode<synchronous>, transform_indices = @transform_2, window_bounds = array<i64: 32, 32>}, {pipeline_mode = #tpu.pipeline_mode<synchronous>, transform_indices = @transform_3, window_bounds = array<i64: 32, 32>}, {pipeline_mode = #tpu.pipeline_mode<synchronous>, transform_indices = @transform_4, window_bounds = array<i64: 32, 32>}, {pipeline_mode = #tpu.pipeline_mode<synchronous>, transform_indices = @transform_5, window_bounds = array<i64: 1, 32>}, {transform_indices = @transform_6, window_bounds = array<i64: 16, 32>}]} {
    %c0 = arith.constant 0 : index
    %c0_0 = arith.constant 0 : index
    %0 = vector.load %arg1[%c0, %c0_0] : memref<16x32xf32, #tpu.memory_space<vmem>>, vector<16x32xf32>
    %1 = arith.truncf %0 : vector<16x32xf32> to vector<16x32xbf16>
    %c0_1 = arith.constant 0 : index
    %c0_2 = arith.constant 0 : index
    %2 = vector.load %arg2[%c0_1, %c0_2] : memref<32x32xbf16, #tpu.memory_space<vmem>>, vector<32x32xbf16>
    %cst = arith.constant dense<0.000000e+00> : vector<16x32xf32>
    %3 = tpu.matmul %1, %2, %cst {dimension_numbers = #tpu.dot_dimension_numbers<[1], [0], [0], [1], [0, 0, 1, 1], [], []>} : vector<16x32xbf16>, vector<32x32xbf16>, vector<16x32xf32> -> vector<16x32xf32>
    %c0_3 = arith.constant 0 : index
    %c0_4 = arith.constant 0 : index
    %4 = vector.load %arg3[%c0_3, %c0_4] : memref<32x32xbf16, #tpu.memory_space<vmem>>, vector<32x32xbf16>
    %cst_5 = arith.constant dense<0.000000e+00> : vector<16x32xf32>
    %5 = tpu.matmul %1, %4, %cst_5 {dimension_numbers = #tpu.dot_dimension_numbers<[1], [0], [0], [1], [0, 0, 1, 1], [], []>} : vector<16x32xbf16>, vector<32x32xbf16>, vector<16x32xf32> -> vector<16x32xf32>
    %c0_6 = arith.constant 0 : index
    %c0_7 = arith.constant 0 : index
    %6 = vector.load %arg4[%c0_6, %c0_7] : memref<32x32xbf16, #tpu.memory_space<vmem>>, vector<32x32xbf16>
    %cst_8 = arith.constant dense<0.000000e+00> : vector<16x32xf32>
    %7 = tpu.matmul %1, %6, %cst_8 {dimension_numbers = #tpu.dot_dimension_numbers<[1], [0], [0], [1], [0, 0, 1, 1], [], []>} : vector<16x32xbf16>, vector<32x32xbf16>, vector<16x32xf32> -> vector<16x32xf32>
    %8 = arith.truncf %3 : vector<16x32xf32> to vector<16x32xbf16>
    %9 = arith.truncf %5 : vector<16x32xf32> to vector<16x32xbf16>
    %10 = arith.truncf %7 : vector<16x32xf32> to vector<16x32xbf16>
    %c0_9 = arith.constant 0 : index
    %c0_10 = arith.constant 0 : index
    %11 = vector.load %arg5[%c0_9, %c0_10] : memref<32x32xbf16, #tpu.memory_space<vmem>>, vector<32x32xbf16>
    %cst_11 = arith.constant 0.000000e+00 : f32
    %12 = vector.broadcast %cst_11 : f32 to vector<16x32xf32>
    %13 = vector.extract_strided_slice %8 {offsets = [0, 0], sizes = [16, 8], strides = [1, 1]} : vector<16x32xbf16> to vector<16x8xbf16>
    %14 = vector.shape_cast %13 : vector<16x8xbf16> to vector<2x8x8xbf16>
    %15 = vector.extract_strided_slice %9 {offsets = [0, 0], sizes = [16, 8], strides = [1, 1]} : vector<16x32xbf16> to vector<16x8xbf16>
    %16 = vector.shape_cast %15 : vector<16x8xbf16> to vector<2x8x8xbf16>
    %17 = vector.extract_strided_slice %10 {offsets = [0, 0], sizes = [16, 8], strides = [1, 1]} : vector<16x32xbf16> to vector<16x8xbf16>
    %18 = vector.shape_cast %17 : vector<16x8xbf16> to vector<2x8x8xbf16>
    "tpu.trace_start"() <{level = 10 : i32, message = "bnd,bmd->bnm"}> : () -> ()
    %cst_12 = arith.constant dense<0.000000e+00> : vector<2x8x8xf32>
    %19 = tpu.matmul %14, %16, %cst_12 {dimension_numbers = #tpu.dot_dimension_numbers<[2], [2], [1], [1], [0, 0, 0, 1, 1, 1], [0], [0]>} : vector<2x8x8xbf16>, vector<2x8x8xbf16>, vector<2x8x8xf32> -> vector<2x8x8xf32>
    "tpu.trace_stop"() : () -> ()
    %cst_13 = arith.constant dense<0xFF800000> : vector<2x8xf32>
    %20 = vector.multi_reduction <maximumf>, %19, %cst_13 [2] : vector<2x8x8xf32> to vector<2x8xf32>
    %21 = vector.shape_cast %20 : vector<2x8xf32> to vector<2x8x1xf32>
    %22 = vector.broadcast %21 : vector<2x8x1xf32> to vector<2x8x8xf32>
    %23 = arith.subf %19, %22 : vector<2x8x8xf32>
    %24 = math.exp %23 : vector<2x8x8xf32>
    %cst_14 = arith.constant dense<0.000000e+00> : vector<2x8xf32>
    %25 = vector.multi_reduction <add>, %24, %cst_14 [2] : vector<2x8x8xf32> to vector<2x8xf32>
    %26 = vector.shape_cast %25 : vector<2x8xf32> to vector<2x8x1xf32>
    %27 = tpu.reciprocal %26 {approx = true} : vector<2x8x1xf32> -> vector<2x8x1xf32>
    %28 = vector.broadcast %27 : vector<2x8x1xf32> to vector<2x8x8xf32>
    %29 = arith.mulf %24, %28 : vector<2x8x8xf32>
    %30 = arith.truncf %29 : vector<2x8x8xf32> to vector<2x8x8xbf16>
    "tpu.trace_start"() <{level = 10 : i32, message = "bnm,bmd->bnd"}> : () -> ()
    %cst_15 = arith.constant dense<0.000000e+00> : vector<2x8x8xf32>
    %31 = tpu.matmul %30, %18, %cst_15 {dimension_numbers = #tpu.dot_dimension_numbers<[2], [1], [1], [2], [0, 0, 0, 1, 1, 2], [0], [0]>} : vector<2x8x8xbf16>, vector<2x8x8xbf16>, vector<2x8x8xf32> -> vector<2x8x8xf32>
    "tpu.trace_stop"() : () -> ()
    %32 = vector.shape_cast %31 : vector<2x8x8xf32> to vector<16x8xf32>
    %33 = arith.truncf %32 : vector<16x8xf32> to vector<16x8xbf16>
    %34 = vector.extract_strided_slice %11 {offsets = [0, 0], sizes = [8, 32], strides = [1, 1]} : vector<32x32xbf16> to vector<8x32xbf16>
    %cst_16 = arith.constant dense<0.000000e+00> : vector<16x32xf32>
    %35 = tpu.matmul %33, %34, %cst_16 {dimension_numbers = #tpu.dot_dimension_numbers<[1], [0], [0], [1], [0, 0, 1, 1], [], []>} : vector<16x8xbf16>, vector<8x32xbf16>, vector<16x32xf32> -> vector<16x32xf32>
    %36 = arith.addf %12, %35 : vector<16x32xf32>
    %37 = vector.extract_strided_slice %8 {offsets = [0, 8], sizes = [16, 8], strides = [1, 1]} : vector<16x32xbf16> to vector<16x8xbf16>
    %38 = vector.shape_cast %37 : vector<16x8xbf16> to vector<2x8x8xbf16>
    %39 = vector.extract_strided_slice %9 {offsets = [0, 8], sizes = [16, 8], strides = [1, 1]} : vector<16x32xbf16> to vector<16x8xbf16>
    %40 = vector.shape_cast %39 : vector<16x8xbf16> to vector<2x8x8xbf16>
    %41 = vector.extract_strided_slice %10 {offsets = [0, 8], sizes = [16, 8], strides = [1, 1]} : vector<16x32xbf16> to vector<16x8xbf16>
    %42 = vector.shape_cast %41 : vector<16x8xbf16> to vector<2x8x8xbf16>
    "tpu.trace_start"() <{level = 10 : i32, message = "bnd,bmd->bnm"}> : () -> ()
    %cst_17 = arith.constant dense<0.000000e+00> : vector<2x8x8xf32>
    %43 = tpu.matmul %38, %40, %cst_17 {dimension_numbers = #tpu.dot_dimension_numbers<[2], [2], [1], [1], [0, 0, 0, 1, 1, 1], [0], [0]>} : vector<2x8x8xbf16>, vector<2x8x8xbf16>, vector<2x8x8xf32> -> vector<2x8x8xf32>
    "tpu.trace_stop"() : () -> ()
    %cst_18 = arith.constant dense<0xFF800000> : vector<2x8xf32>
    %44 = vector.multi_reduction <maximumf>, %43, %cst_18 [2] : vector<2x8x8xf32> to vector<2x8xf32>
    %45 = vector.shape_cast %44 : vector<2x8xf32> to vector<2x8x1xf32>
    %46 = vector.broadcast %45 : vector<2x8x1xf32> to vector<2x8x8xf32>
    %47 = arith.subf %43, %46 : vector<2x8x8xf32>
    %48 = math.exp %47 : vector<2x8x8xf32>
    %cst_19 = arith.constant dense<0.000000e+00> : vector<2x8xf32>
    %49 = vector.multi_reduction <add>, %48, %cst_19 [2] : vector<2x8x8xf32> to vector<2x8xf32>
    %50 = vector.shape_cast %49 : vector<2x8xf32> to vector<2x8x1xf32>
    %51 = tpu.reciprocal %50 {approx = true} : vector<2x8x1xf32> -> vector<2x8x1xf32>
    %52 = vector.broadcast %51 : vector<2x8x1xf32> to vector<2x8x8xf32>
    %53 = arith.mulf %48, %52 : vector<2x8x8xf32>
    %54 = arith.truncf %53 : vector<2x8x8xf32> to vector<2x8x8xbf16>
    "tpu.trace_start"() <{level = 10 : i32, message = "bnm,bmd->bnd"}> : () -> ()
    %cst_20 = arith.constant dense<0.000000e+00> : vector<2x8x8xf32>
    %55 = tpu.matmul %54, %42, %cst_20 {dimension_numbers = #tpu.dot_dimension_numbers<[2], [1], [1], [2], [0, 0, 0, 1, 1, 2], [0], [0]>} : vector<2x8x8xbf16>, vector<2x8x8xbf16>, vector<2x8x8xf32> -> vector<2x8x8xf32>
    "tpu.trace_stop"() : () -> ()
    %56 = vector.shape_cast %55 : vector<2x8x8xf32> to vector<16x8xf32>
    %57 = arith.truncf %56 : vector<16x8xf32> to vector<16x8xbf16>
    %58 = vector.extract_strided_slice %11 {offsets = [8, 0], sizes = [8, 32], strides = [1, 1]} : vector<32x32xbf16> to vector<8x32xbf16>
    %cst_21 = arith.constant dense<0.000000e+00> : vector<16x32xf32>
    %59 = tpu.matmul %57, %58, %cst_21 {dimension_numbers = #tpu.dot_dimension_numbers<[1], [0], [0], [1], [0, 0, 1, 1], [], []>} : vector<16x8xbf16>, vector<8x32xbf16>, vector<16x32xf32> -> vector<16x32xf32>
    %60 = arith.addf %36, %59 : vector<16x32xf32>
    %61 = vector.extract_strided_slice %8 {offsets = [0, 16], sizes = [16, 8], strides = [1, 1]} : vector<16x32xbf16> to vector<16x8xbf16>
    %62 = vector.shape_cast %61 : vector<16x8xbf16> to vector<2x8x8xbf16>
    %63 = vector.extract_strided_slice %9 {offsets = [0, 16], sizes = [16, 8], strides = [1, 1]} : vector<16x32xbf16> to vector<16x8xbf16>
    %64 = vector.shape_cast %63 : vector<16x8xbf16> to vector<2x8x8xbf16>
    %65 = vector.extract_strided_slice %10 {offsets = [0, 16], sizes = [16, 8], strides = [1, 1]} : vector<16x32xbf16> to vector<16x8xbf16>
    %66 = vector.shape_cast %65 : vector<16x8xbf16> to vector<2x8x8xbf16>
    "tpu.trace_start"() <{level = 10 : i32, message = "bnd,bmd->bnm"}> : () -> ()
    %cst_22 = arith.constant dense<0.000000e+00> : vector<2x8x8xf32>
    %67 = tpu.matmul %62, %64, %cst_22 {dimension_numbers = #tpu.dot_dimension_numbers<[2], [2], [1], [1], [0, 0, 0, 1, 1, 1], [0], [0]>} : vector<2x8x8xbf16>, vector<2x8x8xbf16>, vector<2x8x8xf32> -> vector<2x8x8xf32>
    "tpu.trace_stop"() : () -> ()
    %cst_23 = arith.constant dense<0xFF800000> : vector<2x8xf32>
    %68 = vector.multi_reduction <maximumf>, %67, %cst_23 [2] : vector<2x8x8xf32> to vector<2x8xf32>
    %69 = vector.shape_cast %68 : vector<2x8xf32> to vector<2x8x1xf32>
    %70 = vector.broadcast %69 : vector<2x8x1xf32> to vector<2x8x8xf32>
    %71 = arith.subf %67, %70 : vector<2x8x8xf32>
    %72 = math.exp %71 : vector<2x8x8xf32>
    %cst_24 = arith.constant dense<0.000000e+00> : vector<2x8xf32>
    %73 = vector.multi_reduction <add>, %72, %cst_24 [2] : vector<2x8x8xf32> to vector<2x8xf32>
    %74 = vector.shape_cast %73 : vector<2x8xf32> to vector<2x8x1xf32>
    %75 = tpu.reciprocal %74 {approx = true} : vector<2x8x1xf32> -> vector<2x8x1xf32>
    %76 = vector.broadcast %75 : vector<2x8x1xf32> to vector<2x8x8xf32>
    %77 = arith.mulf %72, %76 : vector<2x8x8xf32>
    %78 = arith.truncf %77 : vector<2x8x8xf32> to vector<2x8x8xbf16>
    "tpu.trace_start"() <{level = 10 : i32, message = "bnm,bmd->bnd"}> : () -> ()
    %cst_25 = arith.constant dense<0.000000e+00> : vector<2x8x8xf32>
    %79 = tpu.matmul %78, %66, %cst_25 {dimension_numbers = #tpu.dot_dimension_numbers<[2], [1], [1], [2], [0, 0, 0, 1, 1, 2], [0], [0]>} : vector<2x8x8xbf16>, vector<2x8x8xbf16>, vector<2x8x8xf32> -> vector<2x8x8xf32>
    "tpu.trace_stop"() : () -> ()
    %80 = vector.shape_cast %79 : vector<2x8x8xf32> to vector<16x8xf32>
    %81 = arith.truncf %80 : vector<16x8xf32> to vector<16x8xbf16>
    %82 = vector.extract_strided_slice %11 {offsets = [16, 0], sizes = [8, 32], strides = [1, 1]} : vector<32x32xbf16> to vector<8x32xbf16>
    %cst_26 = arith.constant dense<0.000000e+00> : vector<16x32xf32>
    %83 = tpu.matmul %81, %82, %cst_26 {dimension_numbers = #tpu.dot_dimension_numbers<[1], [0], [0], [1], [0, 0, 1, 1], [], []>} : vector<16x8xbf16>, vector<8x32xbf16>, vector<16x32xf32> -> vector<16x32xf32>
    %84 = arith.addf %60, %83 : vector<16x32xf32>
    %85 = vector.extract_strided_slice %8 {offsets = [0, 24], sizes = [16, 8], strides = [1, 1]} : vector<16x32xbf16> to vector<16x8xbf16>
    %86 = vector.shape_cast %85 : vector<16x8xbf16> to vector<2x8x8xbf16>
    %87 = vector.extract_strided_slice %9 {offsets = [0, 24], sizes = [16, 8], strides = [1, 1]} : vector<16x32xbf16> to vector<16x8xbf16>
    %88 = vector.shape_cast %87 : vector<16x8xbf16> to vector<2x8x8xbf16>
    %89 = vector.extract_strided_slice %10 {offsets = [0, 24], sizes = [16, 8], strides = [1, 1]} : vector<16x32xbf16> to vector<16x8xbf16>
    %90 = vector.shape_cast %89 : vector<16x8xbf16> to vector<2x8x8xbf16>
    "tpu.trace_start"() <{level = 10 : i32, message = "bnd,bmd->bnm"}> : () -> ()
    %cst_27 = arith.constant dense<0.000000e+00> : vector<2x8x8xf32>
    %91 = tpu.matmul %86, %88, %cst_27 {dimension_numbers = #tpu.dot_dimension_numbers<[2], [2], [1], [1], [0, 0, 0, 1, 1, 1], [0], [0]>} : vector<2x8x8xbf16>, vector<2x8x8xbf16>, vector<2x8x8xf32> -> vector<2x8x8xf32>
    "tpu.trace_stop"() : () -> ()
    %cst_28 = arith.constant dense<0xFF800000> : vector<2x8xf32>
    %92 = vector.multi_reduction <maximumf>, %91, %cst_28 [2] : vector<2x8x8xf32> to vector<2x8xf32>
    %93 = vector.shape_cast %92 : vector<2x8xf32> to vector<2x8x1xf32>
    %94 = vector.broadcast %93 : vector<2x8x1xf32> to vector<2x8x8xf32>
    %95 = arith.subf %91, %94 : vector<2x8x8xf32>
    %96 = math.exp %95 : vector<2x8x8xf32>
    %cst_29 = arith.constant dense<0.000000e+00> : vector<2x8xf32>
    %97 = vector.multi_reduction <add>, %96, %cst_29 [2] : vector<2x8x8xf32> to vector<2x8xf32>
    %98 = vector.shape_cast %97 : vector<2x8xf32> to vector<2x8x1xf32>
    %99 = tpu.reciprocal %98 {approx = true} : vector<2x8x1xf32> -> vector<2x8x1xf32>
    %100 = vector.broadcast %99 : vector<2x8x1xf32> to vector<2x8x8xf32>
    %101 = arith.mulf %96, %100 : vector<2x8x8xf32>
    %102 = arith.truncf %101 : vector<2x8x8xf32> to vector<2x8x8xbf16>
    "tpu.trace_start"() <{level = 10 : i32, message = "bnm,bmd->bnd"}> : () -> ()
    %cst_30 = arith.constant dense<0.000000e+00> : vector<2x8x8xf32>
    %103 = tpu.matmul %102, %90, %cst_30 {dimension_numbers = #tpu.dot_dimension_numbers<[2], [1], [1], [2], [0, 0, 0, 1, 1, 2], [0], [0]>} : vector<2x8x8xbf16>, vector<2x8x8xbf16>, vector<2x8x8xf32> -> vector<2x8x8xf32>
    "tpu.trace_stop"() : () -> ()
    %104 = vector.shape_cast %103 : vector<2x8x8xf32> to vector<16x8xf32>
    %105 = arith.truncf %104 : vector<16x8xf32> to vector<16x8xbf16>
    %106 = vector.extract_strided_slice %11 {offsets = [24, 0], sizes = [8, 32], strides = [1, 1]} : vector<32x32xbf16> to vector<8x32xbf16>
    %cst_31 = arith.constant dense<0.000000e+00> : vector<16x32xf32>
    %107 = tpu.matmul %105, %106, %cst_31 {dimension_numbers = #tpu.dot_dimension_numbers<[1], [0], [0], [1], [0, 0, 1, 1], [], []>} : vector<16x8xbf16>, vector<8x32xbf16>, vector<16x32xf32> -> vector<16x32xf32>
    %108 = arith.addf %84, %107 : vector<16x32xf32>
    %c0_32 = arith.constant 0 : index
    %c0_33 = arith.constant 0 : index
    %109 = vector.load %arg6[%c0_32, %c0_33] : memref<1x32xf32, #tpu.memory_space<vmem>>, vector<1x32xf32>
    %110 = vector.broadcast %109 : vector<1x32xf32> to vector<16x32xf32>
    %111 = arith.addf %108, %110 : vector<16x32xf32>
    %c0_34 = arith.constant 0 : index
    %c0_35 = arith.constant 0 : index
    %112 = vector.load %arg7[%c0_34, %c0_35] : memref<16x32xf32, #tpu.memory_space<vmem>>, vector<16x32xf32>
    tpu.vector_store %arg7[%c0_34, %c0_35], %111 {strides = array<i32>} : memref<16x32xf32, #tpu.memory_space<vmem>>, vector<16x32xf32>,
    return
  }
  func.func @transform_0(%arg0: i32) -> (i32, i32) {
    %c0_i32 = arith.constant 0 : i32
    %c0_i32_0 = arith.constant 0 : i32
    return %arg0, %c0_i32 : i32, i32
  }
  func.func @transform_1(%arg0: i32) -> (i32, i32) {
    %c0_i32 = arith.constant 0 : i32
    %c0_i32_0 = arith.constant 0 : i32
    %c0_i32_1 = arith.constant 0 : i32
    return %c0_i32, %c0_i32_0 : i32, i32
  }
  func.func @transform_2(%arg0: i32) -> (i32, i32) {
    %c0_i32 = arith.constant 0 : i32
    %c0_i32_0 = arith.constant 0 : i32
    %c0_i32_1 = arith.constant 0 : i32
    return %c0_i32, %c0_i32_0 : i32, i32
  }
  func.func @transform_3(%arg0: i32) -> (i32, i32) {
    %c0_i32 = arith.constant 0 : i32
    %c0_i32_0 = arith.constant 0 : i32
    %c0_i32_1 = arith.constant 0 : i32
    return %c0_i32, %c0_i32_0 : i32, i32
  }
  func.func @transform_4(%arg0: i32) -> (i32, i32) {
    %c0_i32 = arith.constant 0 : i32
    %c0_i32_0 = arith.constant 0 : i32
    %c0_i32_1 = arith.constant 0 : i32
    return %c0_i32, %c0_i32_0 : i32, i32
  }
  func.func @transform_5(%arg0: i32) -> (i32, i32) {
    %c0_i32 = arith.constant 0 : i32
    %c0_i32_0 = arith.constant 0 : i32
    %c0_i32_1 = arith.constant 0 : i32
    return %c0_i32, %c0_i32_0 : i32, i32
  }
  func.func @transform_6(%arg0: i32) -> (i32, i32) {
    %c0_i32 = arith.constant 0 : i32
    %c0_i32_0 = arith.constant 0 : i32
    return %arg0, %c0_i32 : i32, i32
  }
}

</mosaic_0001>

<llo_original>
// kernel: tpu_custom_call.1
$region0: #{tpu_custom_call.1}
  #allocation0 [shape = 'u32[]', space=smem, size = 0x4, offset = 0x4, fixed_abs, tag = 'smem constant byte address 0x4 - core index']
  #allocation1 [shape = 'u32[144,128]{1,0:T(1,128)}', space=vmem, size = 0x12000, scoped, tag = 'internal scratch']
  %s0 = inlined_call_operand.hbm [shape: f32[16,32], index: 0, kind: input, shape index: {}]
  %s1 = inlined_call_operand.hbm [shape: bf16[32,32], index: 1, kind: input, shape index: {}]
  %s2 = inlined_call_operand.hbm [shape: bf16[32,32], index: 2, kind: input, shape index: {}]
  %s3 = inlined_call_operand.hbm [shape: bf16[32,32], index: 3, kind: input, shape index: {}]
  %s4 = inlined_call_operand.hbm [shape: bf16[32,32], index: 4, kind: input, shape index: {}]
  %s5 = inlined_call_operand.vmem [shape: f32[1,32], index: 5, kind: input, shape index: {}]
  %s6 = inlined_call_operand.hbm [shape: f32[16,32], index: 6, kind: output, shape index: {}]
  %s7 = sld [smem:[#allocation0]]
  $region54: #{tpu_custom_call.1} parent=0
    _
  %s9 = ssub.s32 1, %s7
  %s10 = scalar_select 0, %s9, %s7
  $region1: #{tpu_custom_call.1} parent=0
    #allocation2 [shape = 'u8[8192]{0}', space=vmem, size = 0x2000, scoped, tag = 'input window, operand 0, single buffered']
    #allocation3 [shape = 's32[1]{0}', space=sflag, size = 0x4, scoped, tag = 'scoped memory for tpu_custom_call.1']
    #allocation4 [shape = 's32[1]{0}', space=sflag, size = 0x4, scoped, tag = 'scoped memory for tpu_custom_call.1']
    #allocation5 [shape = 'u8[8192]{0}', space=vmem, size = 0x2000, scoped, tag = 'input window, operand 1, single buffered']
    #allocation6 [shape = 's32[1]{0}', space=sflag, size = 0x4, scoped, tag = 'scoped memory for tpu_custom_call.1']
    #allocation7 [shape = 'u8[8192]{0}', space=vmem, size = 0x2000, scoped, tag = 'input window, operand 2, single buffered']
    #allocation8 [shape = 'u8[8192]{0}', space=vmem, size = 0x2000, scoped, tag = 'input window, operand 3, single buffered']
    #allocation9 [shape = 's32[1]{0}', space=sflag, size = 0x4, scoped, tag = 'scoped memory for tpu_custom_call.1']
    #allocation10 [shape = 'u8[8192]{0}', space=vmem, size = 0x2000, scoped, tag = 'input window, operand 4, single buffered']
    #allocation11 [shape = 'u8[8192]{0}', space=vmem, size = 0x2000, scoped, tag = 'output window, operand 0, single buffered']
    %11 = vsyncpa [#allocation3], 0
    %12 = vsyncpa [#allocation6], 0
    %13 = vsyncpa [#allocation9], 0
    %14 = vsyncpa [#allocation4], 0
    // Predicated region
    $region2: #{tpu_custom_call.1} parent=1 // pred_check
      _
    $region3: #{tpu_custom_call.1} parent=1 // pred_check_branch
      %16 = sbr.rel (0) target = $region5
    $region4: #{tpu_custom_call.1} parent=1 // pred_region
      %s18 = ssub.s32 256, 256
      %19 = vsyncadd [#allocation3], %s18
      %s20 = sshll.u32 [#allocation2], 4
      %s21 = int_to_ptr.vmem [resolvable:$true] %s20
      %26 = dma.hbm_to_vmem [thread:$0]  %s0, 256, %s21, [#allocation3], 128, 128, 8
    $region5: #{tpu_custom_call.1} parent=1 // pred_fallthru
      _
    // Predicated region
    $region6: #{tpu_custom_call.1} parent=1 // pred_check
      _
    $region7: #{tpu_custom_call.1} parent=1 // pred_check_branch
      %28 = sbr.rel (0) target = $region9
    $region8: #{tpu_custom_call.1} parent=1 // pred_region
      %s30 = ssub.s32 256, 256
      %31 = vsyncadd [#allocation6], %s30
      %s32 = sshll.u32 [#allocation5], 4
      %s33 = int_to_ptr.vmem [resolvable:$true] %s32
      %38 = dma.hbm_to_vmem [thread:$0]  %s1, 256, %s33, [#allocation6], 64, 64, 4
    $region9: #{tpu_custom_call.1} parent=1 // pred_fallthru
      _
    // Predicated region
    $region10: #{tpu_custom_call.1} parent=1 // pred_check
      _
    $region11: #{tpu_custom_call.1} parent=1 // pred_check_branch
      %40 = sbr.rel (0) target = $region13
    $region12: #{tpu_custom_call.1} parent=1 // pred_region
      %s42 = ssub.s32 256, 256
      %43 = vsyncadd [#allocation6], %s42
      %s44 = sshll.u32 [#allocation7], 4
      %s45 = int_to_ptr.vmem [resolvable:$true] %s44
      %50 = dma.hbm_to_vmem [thread:$0]  %s2, 256, %s45, [#allocation6], 64, 64, 4
    $region13: #{tpu_custom_call.1} parent=1 // pred_fallthru
      _
    // Predicated region
    $region14: #{tpu_custom_call.1} parent=1 // pred_check
      _
    $region15: #{tpu_custom_call.1} parent=1 // pred_check_branch
      %52 = sbr.rel (0) target = $region17
    $region16: #{tpu_custom_call.1} parent=1 // pred_region
      %s54 = ssub.s32 256, 256
      %55 = vsyncadd [#allocation9], %s54
      %s56 = sshll.u32 [#allocation8], 4
      %s57 = int_to_ptr.vmem [resolvable:$true] %s56
      %62 = dma.hbm_to_vmem [thread:$0]  %s3, 256, %s57, [#allocation9], 64, 64, 4
    $region17: #{tpu_custom_call.1} parent=1 // pred_fallthru
      _
    // Predicated region
    $region18: #{tpu_custom_call.1} parent=1 // pred_check
      _
    $region19: #{tpu_custom_call.1} parent=1 // pred_check_branch
      %64 = sbr.rel (0) target = $region21
    $region20: #{tpu_custom_call.1} parent=1 // pred_region
      %s66 = ssub.s32 256, 256
      %67 = vsyncadd [#allocation9], %s66
      %s68 = sshll.u32 [#allocation10], 4
      %s69 = int_to_ptr.vmem [resolvable:$true] %s68
      %74 = dma.hbm_to_vmem [thread:$0]  %s4, 256, %s69, [#allocation9], 64, 64, 4
    $region21: #{tpu_custom_call.1} parent=1 // pred_fallthru
      _
    // Predicated region
    $region22: #{tpu_custom_call.1} parent=1 // pred_check
      _
    $region23: #{tpu_custom_call.1} parent=1 // pred_check_branch
      %76 = sbr.rel (0) target = $region25
    $region24: #{tpu_custom_call.1} parent=1 // pred_region
      _
    $region25: #{tpu_custom_call.1} parent=1 // pred_fallthru
      _
    // Predicated region
    $region26: #{tpu_custom_call.1} parent=1 // pred_check
      _
    $region27: #{tpu_custom_call.1} parent=1 // pred_check_branch
      %78 = sbr.rel (0) target = $region29
    $region28: #{tpu_custom_call.1} parent=1 // pred_region
      %79 = dma.done [#allocation3], 256
    $region29: #{tpu_custom_call.1} parent=1 // pred_fallthru
      _
    // Predicated region
    $region30: #{tpu_custom_call.1} parent=1 // pred_check
      _
    $region31: #{tpu_custom_call.1} parent=1 // pred_check_branch
      %81 = sbr.rel (0) target = $region33
    $region32: #{tpu_custom_call.1} parent=1 // pred_region
      %82 = dma.done [#allocation6], 256
    $region33: #{tpu_custom_call.1} parent=1 // pred_fallthru
      _
    // Predicated region
    $region34: #{tpu_custom_call.1} parent=1 // pred_check
      _
    $region35: #{tpu_custom_call.1} parent=1 // pred_check_branch
      %84 = sbr.rel (0) target = $region37
    $region36: #{tpu_custom_call.1} parent=1 // pred_region
      %85 = dma.done [#allocation6], 256
    $region37: #{tpu_custom_call.1} parent=1 // pred_fallthru
      _
    // Predicated region
    $region38: #{tpu_custom_call.1} parent=1 // pred_check
      _
    $region39: #{tpu_custom_call.1} parent=1 // pred_check_branch
      %87 = sbr.rel (0) target = $region41
    $region40: #{tpu_custom_call.1} parent=1 // pred_region
      %88 = dma.done [#allocation9], 256
    $region41: #{tpu_custom_call.1} parent=1 // pred_fallthru
      _
    // Predicated region
    $region42: #{tpu_custom_call.1} parent=1 // pred_check
      _
    $region43: #{tpu_custom_call.1} parent=1 // pred_check_branch
      %90 = sbr.rel (0) target = $region45
    $region44: #{tpu_custom_call.1} parent=1 // pred_region
      %91 = dma.done [#allocation9], 256
    $region45: #{tpu_custom_call.1} parent=1 // pred_fallthru
      _
    %v93 = vld [vmem:[#allocation2] sm:$0xff]
    %v94 = vld [vmem:[#allocation2 + $0x8] sm:$0xff]
    %v95 = vpack.c.bf16 %v94, %v93
    %v96 = vld [vmem:[#allocation5] sm:$0xf]
    %v97 = vld [vmem:[#allocation5 + $0x4] sm:$0xf]
    %v98 = vld [vmem:[#allocation5 + $0x8] sm:$0xf]
    %v99 = vld [vmem:[#allocation5 + $0xc] sm:$0xf]
    %v104 = vunpack.c.l.b16 %v96
    %v105 = vunpack.c.l.b16 %v97
    %v106 = vunpack.c.l.b16 %v98
    %v107 = vunpack.c.l.b16 %v99
    %v108 = vpack.c.b16 %v105, %v104
    %v109 = vpack.c.b16 %v107, %v106
    %vm112 = vcmask 261120
    %v114 = vsel %vm112, %v95, 0
    %116 = vmatprep.subr.bf16.mxu0 0
    %117 = vmatpush1.bf16.msra.mxu0 %v108
    %118 = vmatprep.subr.bf16.mxu0 0
    %119 = vmatpush1.bf16.msra.mxu0 %v109
    %120 = vmatprep.subr.bf16.mxu0 0
    %121 = vmatpush1.bf16.msra.mxu0 0
    %122 = vmatprep.subr.bf16.mxu0 0
    %123 = vmatpush1.bf16.msra.mxu0 0
    %124 = vmatprep.subr.bf16.mxu0 0
    %125 = vmatpush1.bf16.msra.mxu0 0
    %126 = vmatprep.subr.bf16.mxu0 0
    %127 = vmatpush1.bf16.msra.mxu0 0
    %128 = vmatprep.subr.bf16.mxu0 0
    %129 = vmatpush1.bf16.msra.mxu0 0
    %130 = vmatprep.subr.bf16.mxu0 0
    %131 = vmatpush1.bf16.msra.mxu0 0
    %132 = vmatprep.subr.bf16.mxu0 0
    %133 = vmatpush1.bf16.msra.mxu0 0
    %134 = vmatprep.subr.bf16.mxu0 0
    %135 = vmatpush1.bf16.msra.mxu0 0
    %136 = vmatprep.subr.bf16.mxu0 0
    %137 = vmatpush1.bf16.msra.mxu0 0
    %138 = vmatprep.subr.bf16.mxu0 0
    %139 = vmatpush1.bf16.msra.mxu0 0
    %140 = vmatprep.subr.bf16.mxu0 0
    %141 = vmatpush1.bf16.msra.mxu0 0
    %142 = vmatprep.subr.bf16.mxu0 0
    %143 = vmatpush1.bf16.msra.mxu0 0
    %144 = vmatprep.subr.bf16.mxu0 0
    %145 = vmatpush1.bf16.msra.mxu0 0
    %146 = vmatprep.subr.bf16.mxu0 0
    %147 = vmatpush1.bf16.msra.mxu0 0
    %148 = vmatprep.mubr.bf16.mxu0 0
    %149 = vmatmul.mubr.bf16.gmra.mrb[0].mxu0 %v114
    %v150 = vpop.f32.mrb[0].mxu0
    %v151 = vadd.f32 0.0, %v150
    %v152 = vpop.f32.mrb[0].mxu0
    %v153 = vpop.f32.mrb[0].mxu0
    %v154 = vadd.f32 0.0, %v153
    %v155 = vpop.f32.mrb[0].mxu0
    %156 = vdwg.mxu0
    %v157 = vld [vmem:[#allocation7] sm:$0xf]
    %v158 = vld [vmem:[#allocation7 + $0x4] sm:$0xf]
    %v159 = vld [vmem:[#allocation7 + $0x8] sm:$0xf]
    %v160 = vld [vmem:[#allocation7 + $0xc] sm:$0xf]
    %v165 = vunpack.c.l.b16 %v157
    %v166 = vunpack.c.l.b16 %v158
    %v167 = vunpack.c.l.b16 %v159
    %v168 = vunpack.c.l.b16 %v160
    %v169 = vpack.c.b16 %v166, %v165
    %v170 = vpack.c.b16 %v168, %v167
    %173 = vmatprep.subr.bf16.mxu0 0
    %174 = vmatpush1.bf16.msra.mxu0 %v169
    %175 = vmatprep.subr.bf16.mxu0 0
    %176 = vmatpush1.bf16.msra.mxu0 %v170
    %177 = vmatprep.subr.bf16.mxu0 0
    %178 = vmatpush1.bf16.msra.mxu0 0
    %179 = vmatprep.subr.bf16.mxu0 0
    %180 = vmatpush1.bf16.msra.mxu0 0
    %181 = vmatprep.subr.bf16.mxu0 0
    %182 = vmatpush1.bf16.msra.mxu0 0
    %183 = vmatprep.subr.bf16.mxu0 0
    %184 = vmatpush1.bf16.msra.mxu0 0
    %185 = vmatprep.subr.bf16.mxu0 0
    %186 = vmatpush1.bf16.msra.mxu0 0
    %187 = vmatprep.subr.bf16.mxu0 0
    %188 = vmatpush1.bf16.msra.mxu0 0
    %189 = vmatprep.subr.bf16.mxu0 0
    %190 = vmatpush1.bf16.msra.mxu0 0
    %191 = vmatprep.subr.bf16.mxu0 0
    %192 = vmatpush1.bf16.msra.mxu0 0
    %193 = vmatprep.subr.bf16.mxu0 0
    %194 = vmatpush1.bf16.msra.mxu0 0
    %195 = vmatprep.subr.bf16.mxu0 0
    %196 = vmatpush1.bf16.msra.mxu0 0
    %197 = vmatprep.subr.bf16.mxu0 0
    %198 = vmatpush1.bf16.msra.mxu0 0
    %199 = vmatprep.subr.bf16.mxu0 0
    %200 = vmatpush1.bf16.msra.mxu0 0
    %201 = vmatprep.subr.bf16.mxu0 0
    %202 = vmatpush1.bf16.msra.mxu0 0
    %203 = vmatprep.subr.bf16.mxu0 0
    %204 = vmatpush1.bf16.msra.mxu0 0
    %205 = vmatprep.mubr.bf16.mxu0 0
    %206 = vmatmul.mubr.bf16.gmra.mrb[0].mxu0 %v114
    %v207 = vpop.f32.mrb[0].mxu0
    %v208 = vadd.f32 0.0, %v207
    %v209 = vpop.f32.mrb[0].mxu0
    %v210 = vpop.f32.mrb[0].mxu0
    %v211 = vadd.f32 0.0, %v210
    %v212 = vpop.f32.mrb[0].mxu0
    %213 = vdwg.mxu0
    %v214 = vld [vmem:[#allocation8] sm:$0xf]
    %v215 = vld [vmem:[#allocation8 + $0x4] sm:$0xf]
    %v216 = vld [vmem:[#allocation8 + $0x8] sm:$0xf]
    %v217 = vld [vmem:[#allocation8 + $0xc] sm:$0xf]
    %v222 = vunpack.c.l.b16 %v214
    %v223 = vunpack.c.l.b16 %v215
    %v224 = vunpack.c.l.b16 %v216
    %v225 = vunpack.c.l.b16 %v217
    %v226 = vpack.c.b16 %v223, %v222
    %v227 = vpack.c.b16 %v225, %v224
    %230 = vmatprep.subr.bf16.mxu0 0
    %231 = vmatpush1.bf16.msra.mxu0 %v226
    %232 = vmatprep.subr.bf16.mxu0 0
    %233 = vmatpush1.bf16.msra.mxu0 %v227
    %234 = vmatprep.subr.bf16.mxu0 0
    %235 = vmatpush1.bf16.msra.mxu0 0
    %236 = vmatprep.subr.bf16.mxu0 0
    %237 = vmatpush1.bf16.msra.mxu0 0
    %238 = vmatprep.subr.bf16.mxu0 0
    %239 = vmatpush1.bf16.msra.mxu0 0
    %240 = vmatprep.subr.bf16.mxu0 0
    %241 = vmatpush1.bf16.msra.mxu0 0
    %242 = vmatprep.subr.bf16.mxu0 0
    %243 = vmatpush1.bf16.msra.mxu0 0
    %244 = vmatprep.subr.bf16.mxu0 0
    %245 = vmatpush1.bf16.msra.mxu0 0
    %246 = vmatprep.subr.bf16.mxu0 0
    %247 = vmatpush1.bf16.msra.mxu0 0
    %248 = vmatprep.subr.bf16.mxu0 0
    %249 = vmatpush1.bf16.msra.mxu0 0
    %250 = vmatprep.subr.bf16.mxu0 0
    %251 = vmatpush1.bf16.msra.mxu0 0
    %252 = vmatprep.subr.bf16.mxu0 0
    %253 = vmatpush1.bf16.msra.mxu0 0
    %254 = vmatprep.subr.bf16.mxu0 0
    %255 = vmatpush1.bf16.msra.mxu0 0
    %256 = vmatprep.subr.bf16.mxu0 0
    %257 = vmatpush1.bf16.msra.mxu0 0
    %258 = vmatprep.subr.bf16.mxu0 0
    %259 = vmatpush1.bf16.msra.mxu0 0
    %260 = vmatprep.subr.bf16.mxu0 0
    %261 = vmatpush1.bf16.msra.mxu0 0
    %262 = vmatprep.mubr.bf16.mxu0 0
    %263 = vmatmul.mubr.bf16.gmra.mrb[0].mxu0 %v114
    %v264 = vpop.f32.mrb[0].mxu0
    %v265 = vadd.f32 0.0, %v264
    %v266 = vpop.f32.mrb[0].mxu0
    %v267 = vpop.f32.mrb[0].mxu0
    %v268 = vadd.f32 0.0, %v267
    %v269 = vpop.f32.mrb[0].mxu0
    %270 = vdwg.mxu0
    %v271 = vpack.c.bf16 %v154, %v151
    %v272 = vpack.c.bf16 %v211, %v208
    %v273 = vpack.c.bf16 %v268, %v265
    %v274 = vld [vmem:[#allocation10] sm:$0xf]
    %v275 = vld [vmem:[#allocation10 + $0x4] sm:$0xf]
    %v276 = vld [vmem:[#allocation10 + $0x8] sm:$0xf]
    %v277 = vld [vmem:[#allocation10 + $0xc] sm:$0xf]
    %v279 = vunpack.c.l.b16 %v271
    %v280 = vunpack.c.h.b16 %v271
    %v281 = vpack.c.b16 %v279, %v279
    %v282 = vpack.c.b16 %v280, %v280
    %v284 = vunpack.c.l.b16 %v272
    %v285 = vunpack.c.h.b16 %v272
    %v286 = vpack.c.b16 %v284, %v284
    %v287 = vpack.c.b16 %v285, %v285
    %v289 = vunpack.c.l.b16 %v273
    %v290 = vunpack.c.h.b16 %v273
    %v291 = vpack.c.b16 %v289, %v289
    %v292 = vpack.c.b16 %v290, %v290
    %vm293 = vcmask 64512
    %v295 = vsel %vm293, %v281, 0
    %v298 = vsel %vm293, %v286, 0
    %300 = vmatprep.subr.bf16.mxu0 0
    %301 = vmatpush1.bf16.xpose.msra.mxu0 %v298
    %302 = vmatprep.subr.bf16.mxu0 0
    %303 = vmatpush1.bf16.xpose.msra.mxu0 0
    %304 = vmatprep.subr.bf16.mxu0 0
    %305 = vmatpush1.bf16.xpose.msra.mxu0 0
    %306 = vmatprep.subr.bf16.mxu0 0
    %307 = vmatpush1.bf16.xpose.msra.mxu0 0
    %308 = vmatprep.subr.bf16.mxu0 0
    %309 = vmatpush1.bf16.xpose.msra.mxu0 0
    %310 = vmatprep.subr.bf16.mxu0 0
    %311 = vmatpush1.bf16.xpose.msra.mxu0 0
    %312 = vmatprep.subr.bf16.mxu0 0
    %313 = vmatpush1.bf16.xpose.msra.mxu0 0
    %314 = vmatprep.subr.bf16.mxu0 0
    %315 = vmatpush1.bf16.xpose.msra.mxu0 0
    %316 = vmatprep.subr.bf16.mxu0 0
    %317 = vmatpush1.bf16.xpose.msra.mxu0 0
    %318 = vmatprep.subr.bf16.mxu0 0
    %319 = vmatpush1.bf16.xpose.msra.mxu0 0
    %320 = vmatprep.subr.bf16.mxu0 0
    %321 = vmatpush1.bf16.xpose.msra.mxu0 0
    %322 = vmatprep.subr.bf16.mxu0 0
    %323 = vmatpush1.bf16.xpose.msra.mxu0 0
    %324 = vmatprep.subr.bf16.mxu0 0
    %325 = vmatpush1.bf16.xpose.msra.mxu0 0
    %326 = vmatprep.subr.bf16.mxu0 0
    %327 = vmatpush1.bf16.xpose.msra.mxu0 0
    %328 = vmatprep.subr.bf16.mxu0 0
    %329 = vmatpush1.bf16.xpose.msra.mxu0 0
    %330 = vmatprep.subr.bf16.mxu0 0
    %331 = vmatpush1.bf16.xpose.msra.mxu0 0
    %332 = vmatprep.mubr.bf16.mxu0 0
    %333 = vmatmul.mubr.bf16.gmra.mrb[0].mxu0 %v295
    %v334 = vpop.f32.mrb[0].mxu0
    %v335 = vadd.f32 0.0, %v334
    %v336 = vpop.f32.mrb[0].mxu0
    %v337 = vpop.f32.mrb[0].mxu0
    %v338 = vpop.f32.mrb[0].mxu0
    %339 = vdwg.mxu0
    %v341 = vsel %vm293, %v282, 0
    %v344 = vsel %vm293, %v287, 0
    %346 = vmatprep.subr.bf16.mxu0 0
    %347 = vmatpush1.bf16.xpose.msra.mxu0 %v344
    %348 = vmatprep.subr.bf16.mxu0 0
    %349 = vmatpush1.bf16.xpose.msra.mxu0 0
    %350 = vmatprep.subr.bf16.mxu0 0
    %351 = vmatpush1.bf16.xpose.msra.mxu0 0
    %352 = vmatprep.subr.bf16.mxu0 0
    %353 = vmatpush1.bf16.xpose.msra.mxu0 0
    %354 = vmatprep.subr.bf16.mxu0 0
    %355 = vmatpush1.bf16.xpose.msra.mxu0 0
    %356 = vmatprep.subr.bf16.mxu0 0
    %357 = vmatpush1.bf16.xpose.msra.mxu0 0
    %358 = vmatprep.subr.bf16.mxu0 0
    %359 = vmatpush1.bf16.xpose.msra.mxu0 0
    %360 = vmatprep.subr.bf16.mxu0 0
    %361 = vmatpush1.bf16.xpose.msra.mxu0 0
    %362 = vmatprep.subr.bf16.mxu0 0
    %363 = vmatpush1.bf16.xpose.msra.mxu0 0
    %364 = vmatprep.subr.bf16.mxu0 0
    %365 = vmatpush1.bf16.xpose.msra.mxu0 0
    %366 = vmatprep.subr.bf16.mxu0 0
    %367 = vmatpush1.bf16.xpose.msra.mxu0 0
    %368 = vmatprep.subr.bf16.mxu0 0
    %369 = vmatpush1.bf16.xpose.msra.mxu0 0
    %370 = vmatprep.subr.bf16.mxu0 0
    %371 = vmatpush1.bf16.xpose.msra.mxu0 0
    %372 = vmatprep.subr.bf16.mxu0 0
    %373 = vmatpush1.bf16.xpose.msra.mxu0 0
    %374 = vmatprep.subr.bf16.mxu0 0
    %375 = vmatpush1.bf16.xpose.msra.mxu0 0
    %376 = vmatprep.subr.bf16.mxu0 0
    %377 = vmatpush1.bf16.xpose.msra.mxu0 0
    %378 = vmatprep.mubr.bf16.mxu0 0
    %379 = vmatmul.mubr.bf16.gmra.mrb[0].mxu0 %v341
    %v380 = vpop.f32.mrb[0].mxu0
    %v381 = vadd.f32 0.0, %v380
    %v382 = vpop.f32.mrb[0].mxu0
    %v383 = vpop.f32.mrb[0].mxu0
    %v384 = vpop.f32.mrb[0].mxu0
    %385 = vdwg.mxu0
    %v386 = vsel %vm293, %v335, -inf
    %387 = vmax.xlane.f32.xlu0 %v386
    %v388 = vpop.xlane.xlu0 %387
    %v389 = vsel %vm293, %v381, -inf
    %390 = vmax.xlane.f32.xlu0 %v389
    %v391 = vpop.xlane.xlu0 %390
    %v392 = vsub.f32 %v335, %v388
    %v393 = vsub.f32 %v381, %v391
    %v394 = vmul.f32 %v392, 1.442695
    %v395 = vpow.pop %v394
    %v396 = vmul.f32 %v393, 1.442695
    %v397 = vpow.pop %v396
    %v398 = vsel %vm293, %v395, 0.0
    %399 = vadd.xlane.f32.xlu0 %v398
    %v400 = vpop.xlane.xlu0 %399
    %v401 = vsel %vm293, %v397, 0.0
    %402 = vadd.xlane.f32.xlu0 %v401
    %v403 = vpop.xlane.xlu0 %402
    %v404 = vrcp.pop %v400
    %v405 = vrcp.pop %v403
    %v406 = vmul.f32 %v395, %v404
    %v407 = vmul.f32 %v397, %v405
    %v408 = vpack.c.bf16 %v406, %v406
    %v409 = vpack.c.bf16 %v407, %v407
    %v411 = vsel %vm293, %v408, 0
    %vm413 = vcmask 1043456
    %v415 = vsel %vm413, %v291, 0
    %417 = vmatprep.subr.bf16.mxu0 0
    %418 = vmatpush1.bf16.msra.mxu0 %v415
    %419 = vmatprep.subr.bf16.mxu0 0
    %420 = vmatpush1.bf16.msra.mxu0 0
    %421 = vmatprep.subr.bf16.mxu0 0
    %422 = vmatpush1.bf16.msra.mxu0 0
    %423 = vmatprep.subr.bf16.mxu0 0
    %424 = vmatpush1.bf16.msra.mxu0 0
    %425 = vmatprep.subr.bf16.mxu0 0
    %426 = vmatpush1.bf16.msra.mxu0 0
    %427 = vmatprep.subr.bf16.mxu0 0
    %428 = vmatpush1.bf16.msra.mxu0 0
    %429 = vmatprep.subr.bf16.mxu0 0
    %430 = vmatpush1.bf16.msra.mxu0 0
    %431 = vmatprep.subr.bf16.mxu0 0
    %432 = vmatpush1.bf16.msra.mxu0 0
    %433 = vmatprep.subr.bf16.mxu0 0
    %434 = vmatpush1.bf16.msra.mxu0 0
    %435 = vmatprep.subr.bf16.mxu0 0
    %436 = vmatpush1.bf16.msra.mxu0 0
    %437 = vmatprep.subr.bf16.mxu0 0
    %438 = vmatpush1.bf16.msra.mxu0 0
    %439 = vmatprep.subr.bf16.mxu0 0
    %440 = vmatpush1.bf16.msra.mxu0 0
    %441 = vmatprep.subr.bf16.mxu0 0
    %442 = vmatpush1.bf16.msra.mxu0 0
    %443 = vmatprep.subr.bf16.mxu0 0
    %444 = vmatpush1.bf16.msra.mxu0 0
    %445 = vmatprep.subr.bf16.mxu0 0
    %446 = vmatpush1.bf16.msra.mxu0 0
    %447 = vmatprep.subr.bf16.mxu0 0
    %448 = vmatpush1.bf16.msra.mxu0 0
    %449 = vmatprep.mubr.bf16.mxu0 0
    %450 = vmatmul.mubr.bf16.gmra.mrb[0].mxu0 %v411
    %v451 = vpop.f32.mrb[0].mxu0
    %v452 = vadd.f32 0.0, %v451
    %v453 = vpop.f32.mrb[0].mxu0
    %v454 = vpop.f32.mrb[0].mxu0
    %v455 = vpop.f32.mrb[0].mxu0
    %456 = vdwg.mxu0
    %v458 = vsel %vm293, %v409, 0
    %v461 = vsel %vm413, %v292, 0
    %463 = vmatprep.subr.bf16.mxu0 0
    %464 = vmatpush1.bf16.msra.mxu0 %v461
    %465 = vmatprep.subr.bf16.mxu0 0
    %466 = vmatpush1.bf16.msra.mxu0 0
    %467 = vmatprep.subr.bf16.mxu0 0
    %468 = vmatpush1.bf16.msra.mxu0 0
    %469 = vmatprep.subr.bf16.mxu0 0
    %470 = vmatpush1.bf16.msra.mxu0 0
    %471 = vmatprep.subr.bf16.mxu0 0
    %472 = vmatpush1.bf16.msra.mxu0 0
    %473 = vmatprep.subr.bf16.mxu0 0
    %474 = vmatpush1.bf16.msra.mxu0 0
    %475 = vmatprep.subr.bf16.mxu0 0
    %476 = vmatpush1.bf16.msra.mxu0 0
    %477 = vmatprep.subr.bf16.mxu0 0
    %478 = vmatpush1.bf16.msra.mxu0 0
    %479 = vmatprep.subr.bf16.mxu0 0
    %480 = vmatpush1.bf16.msra.mxu0 0
    %481 = vmatprep.subr.bf16.mxu0 0
    %482 = vmatpush1.bf16.msra.mxu0 0
    %483 = vmatprep.subr.bf16.mxu0 0
    %484 = vmatpush1.bf16.msra.mxu0 0
    %485 = vmatprep.subr.bf16.mxu0 0
    %486 = vmatpush1.bf16.msra.mxu0 0
    %487 = vmatprep.subr.bf16.mxu0 0
    %488 = vmatpush1.bf16.msra.mxu0 0
    %489 = vmatprep.subr.bf16.mxu0 0
    %490 = vmatpush1.bf16.msra.mxu0 0
    %491 = vmatprep.subr.bf16.mxu0 0
    %492 = vmatpush1.bf16.msra.mxu0 0
    %493 = vmatprep.subr.bf16.mxu0 0
    %494 = vmatpush1.bf16.msra.mxu0 0
    %495 = vmatprep.mubr.bf16.mxu0 0
    %496 = vmatmul.mubr.bf16.gmra.mrb[0].mxu0 %v458
    %v497 = vpop.f32.mrb[0].mxu0
    %v498 = vadd.f32 0.0, %v497
    %v499 = vpop.f32.mrb[0].mxu0
    %v500 = vpop.f32.mrb[0].mxu0
    %v501 = vpop.f32.mrb[0].mxu0
    %502 = vdwg.mxu0
    %v503 = vpack.c.bf16 %v498, %v452
    %504 = vrot.lane.b32.xlu0 %v281, 120
    %v505 = vpop.permute.xlu0 %504
    %506 = vrot.lane.b32.xlu0 %v286, 120
    %v507 = vpop.permute.xlu0 %506
    %v509 = vsel %vm293, %v505, 0
    %v512 = vsel %vm293, %v507, 0
    %514 = vmatprep.subr.bf16.mxu0 0
    %515 = vmatpush1.bf16.xpose.msra.mxu0 %v512
    %516 = vmatprep.subr.bf16.mxu0 0
    %517 = vmatpush1.bf16.xpose.msra.mxu0 0
    %518 = vmatprep.subr.bf16.mxu0 0
    %519 = vmatpush1.bf16.xpose.msra.mxu0 0
    %520 = vmatprep.subr.bf16.mxu0 0
    %521 = vmatpush1.bf16.xpose.msra.mxu0 0
    %522 = vmatprep.subr.bf16.mxu0 0
    %523 = vmatpush1.bf16.xpose.msra.mxu0 0
    %524 = vmatprep.subr.bf16.mxu0 0
    %525 = vmatpush1.bf16.xpose.msra.mxu0 0
    %526 = vmatprep.subr.bf16.mxu0 0
    %527 = vmatpush1.bf16.xpose.msra.mxu0 0
    %528 = vmatprep.subr.bf16.mxu0 0
    %529 = vmatpush1.bf16.xpose.msra.mxu0 0
    %530 = vmatprep.subr.bf16.mxu0 0
    %531 = vmatpush1.bf16.xpose.msra.mxu0 0
    %532 = vmatprep.subr.bf16.mxu0 0
    %533 = vmatpush1.bf16.xpose.msra.mxu0 0
    %534 = vmatprep.subr.bf16.mxu0 0
    %535 = vmatpush1.bf16.xpose.msra.mxu0 0
    %536 = vmatprep.subr.bf16.mxu0 0
    %537 = vmatpush1.bf16.xpose.msra.mxu0 0
    %538 = vmatprep.subr.bf16.mxu0 0
    %539 = vmatpush1.bf16.xpose.msra.mxu0 0
    %540 = vmatprep.subr.bf16.mxu0 0
    %541 = vmatpush1.bf16.xpose.msra.mxu0 0
    %542 = vmatprep.subr.bf16.mxu0 0
    %543 = vmatpush1.bf16.xpose.msra.mxu0 0
    %544 = vmatprep.subr.bf16.mxu0 0
    %545 = vmatpush1.bf16.xpose.msra.mxu0 0
    %546 = vmatprep.mubr.bf16.mxu0 0
    %547 = vmatmul.mubr.bf16.gmra.mrb[0].mxu0 %v509
    %v548 = vpop.f32.mrb[0].mxu0
    %v549 = vadd.f32 0.0, %v548
    %v550 = vpop.f32.mrb[0].mxu0
    %v551 = vpop.f32.mrb[0].mxu0
    %v552 = vpop.f32.mrb[0].mxu0
    %553 = vdwg.mxu0
    %554 = vrot.lane.b32.xlu0 %v282, 120
    %v555 = vpop.permute.xlu0 %554
    %556 = vrot.lane.b32.xlu0 %v287, 120
    %v557 = vpop.permute.xlu0 %556
    %v559 = vsel %vm293, %v555, 0
    %v562 = vsel %vm293, %v557, 0
    %564 = vmatprep.subr.bf16.mxu0 0
    %565 = vmatpush1.bf16.xpose.msra.mxu0 %v562
    %566 = vmatprep.subr.bf16.mxu0 0
    %567 = vmatpush1.bf16.xpose.msra.mxu0 0
    %568 = vmatprep.subr.bf16.mxu0 0
    %569 = vmatpush1.bf16.xpose.msra.mxu0 0
    %570 = vmatprep.subr.bf16.mxu0 0
    %571 = vmatpush1.bf16.xpose.msra.mxu0 0
    %572 = vmatprep.subr.bf16.mxu0 0
    %573 = vmatpush1.bf16.xpose.msra.mxu0 0
    %574 = vmatprep.subr.bf16.mxu0 0
    %575 = vmatpush1.bf16.xpose.msra.mxu0 0
    %576 = vmatprep.subr.bf16.mxu0 0
    %577 = vmatpush1.bf16.xpose.msra.mxu0 0
    %578 = vmatprep.subr.bf16.mxu0 0
    %579 = vmatpush1.bf16.xpose.msra.mxu0 0
    %580 = vmatprep.subr.bf16.mxu0 0
    %581 = vmatpush1.bf16.xpose.msra.mxu0 0
    %582 = vmatprep.subr.bf16.mxu0 0
    %583 = vmatpush1.bf16.xpose.msra.mxu0 0
    %584 = vmatprep.subr.bf16.mxu0 0
    %585 = vmatpush1.bf16.xpose.msra.mxu0 0
    %586 = vmatprep.subr.bf16.mxu0 0
    %587 = vmatpush1.bf16.xpose.msra.mxu0 0
    %588 = vmatprep.subr.bf16.mxu0 0
    %589 = vmatpush1.bf16.xpose.msra.mxu0 0
    %590 = vmatprep.subr.bf16.mxu0 0
    %591 = vmatpush1.bf16.xpose.msra.mxu0 0
    %592 = vmatprep.subr.bf16.mxu0 0
    %593 = vmatpush1.bf16.xpose.msra.mxu0 0
    %594 = vmatprep.subr.bf16.mxu0 0
    %595 = vmatpush1.bf16.xpose.msra.mxu0 0
    %596 = vmatprep.mubr.bf16.mxu0 0
    %597 = vmatmul.mubr.bf16.gmra.mrb[0].mxu0 %v559
    %v598 = vpop.f32.mrb[0].mxu0
    %v599 = vadd.f32 0.0, %v598
    %v600 = vpop.f32.mrb[0].mxu0
    %v601 = vpop.f32.mrb[0].mxu0
    %v602 = vpop.f32.mrb[0].mxu0
    %603 = vdwg.mxu0
    %v604 = vsel %vm293, %v549, -inf
    %605 = vmax.xlane.f32.xlu0 %v604
    %v606 = vpop.xlane.xlu0 %605
    %v607 = vsel %vm293, %v599, -inf
    %608 = vmax.xlane.f32.xlu0 %v607
    %v609 = vpop.xlane.xlu0 %608
    %v610 = vsub.f32 %v549, %v606
    %v611 = vsub.f32 %v599, %v609
    %v612 = vmul.f32 %v610, 1.442695
    %v613 = vpow.pop %v612
    %v614 = vmul.f32 %v611, 1.442695
    %v615 = vpow.pop %v614
    %v616 = vsel %vm293, %v613, 0.0
    %617 = vadd.xlane.f32.xlu0 %v616
    %v618 = vpop.xlane.xlu0 %617
    %v619 = vsel %vm293, %v615, 0.0
    %620 = vadd.xlane.f32.xlu0 %v619
    %v621 = vpop.xlane.xlu0 %620
    %v622 = vrcp.pop %v618
    %v623 = vrcp.pop %v621
    %v624 = vmul.f32 %v613, %v622
    %v625 = vmul.f32 %v615, %v623
    %v626 = vpack.c.bf16 %v624, %v624
    %v627 = vpack.c.bf16 %v625, %v625
    %628 = vrot.lane.b32.xlu0 %v291, 120
    %v629 = vpop.permute.xlu0 %628
    %v631 = vsel %vm293, %v626, 0
    %v634 = vsel %vm413, %v629, 0
    %636 = vmatprep.subr.bf16.mxu0 0
    %637 = vmatpush1.bf16.msra.mxu0 %v634
    %638 = vmatprep.subr.bf16.mxu0 0
    %639 = vmatpush1.bf16.msra.mxu0 0
    %640 = vmatprep.subr.bf16.mxu0 0
    %641 = vmatpush1.bf16.msra.mxu0 0
    %642 = vmatprep.subr.bf16.mxu0 0
    %643 = vmatpush1.bf16.msra.mxu0 0
    %644 = vmatprep.subr.bf16.mxu0 0
    %645 = vmatpush1.bf16.msra.mxu0 0
    %646 = vmatprep.subr.bf16.mxu0 0
    %647 = vmatpush1.bf16.msra.mxu0 0
    %648 = vmatprep.subr.bf16.mxu0 0
    %649 = vmatpush1.bf16.msra.mxu0 0
    %650 = vmatprep.subr.bf16.mxu0 0
    %651 = vmatpush1.bf16.msra.mxu0 0
    %652 = vmatprep.subr.bf16.mxu0 0
    %653 = vmatpush1.bf16.msra.mxu0 0
    %654 = vmatprep.subr.bf16.mxu0 0
    %655 = vmatpush1.bf16.msra.mxu0 0
    %656 = vmatprep.subr.bf16.mxu0 0
    %657 = vmatpush1.bf16.msra.mxu0 0
    %658 = vmatprep.subr.bf16.mxu0 0
    %659 = vmatpush1.bf16.msra.mxu0 0
    %660 = vmatprep.subr.bf16.mxu0 0
    %661 = vmatpush1.bf16.msra.mxu0 0
    %662 = vmatprep.subr.bf16.mxu0 0
    %663 = vmatpush1.bf16.msra.mxu0 0
    %664 = vmatprep.subr.bf16.mxu0 0
    %665 = vmatpush1.bf16.msra.mxu0 0
    %666 = vmatprep.subr.bf16.mxu0 0
    %667 = vmatpush1.bf16.msra.mxu0 0
    %668 = vmatprep.mubr.bf16.mxu0 0
    %669 = vmatmul.mubr.bf16.gmra.mrb[0].mxu0 %v631
    %v670 = vpop.f32.mrb[0].mxu0
    %v671 = vadd.f32 0.0, %v670
    %v672 = vpop.f32.mrb[0].mxu0
    %v673 = vpop.f32.mrb[0].mxu0
    %v674 = vpop.f32.mrb[0].mxu0
    %675 = vdwg.mxu0
    %676 = vrot.lane.b32.xlu0 %v292, 120
    %v677 = vpop.permute.xlu0 %676
    %v679 = vsel %vm293, %v627, 0
    %v682 = vsel %vm413, %v677, 0
    %684 = vmatprep.subr.bf16.mxu0 0
    %685 = vmatpush1.bf16.msra.mxu0 %v682
    %686 = vmatprep.subr.bf16.mxu0 0
    %687 = vmatpush1.bf16.msra.mxu0 0
    %688 = vmatprep.subr.bf16.mxu0 0
    %689 = vmatpush1.bf16.msra.mxu0 0
    %690 = vmatprep.subr.bf16.mxu0 0
    %691 = vmatpush1.bf16.msra.mxu0 0
    %692 = vmatprep.subr.bf16.mxu0 0
    %693 = vmatpush1.bf16.msra.mxu0 0
    %694 = vmatprep.subr.bf16.mxu0 0
    %695 = vmatpush1.bf16.msra.mxu0 0
    %696 = vmatprep.subr.bf16.mxu0 0
    %697 = vmatpush1.bf16.msra.mxu0 0
    %698 = vmatprep.subr.bf16.mxu0 0
    %699 = vmatpush1.bf16.msra.mxu0 0
    %700 = vmatprep.subr.bf16.mxu0 0
    %701 = vmatpush1.bf16.msra.mxu0 0
    %702 = vmatprep.subr.bf16.mxu0 0
    %703 = vmatpush1.bf16.msra.mxu0 0
    %704 = vmatprep.subr.bf16.mxu0 0
    %705 = vmatpush1.bf16.msra.mxu0 0
    %706 = vmatprep.subr.bf16.mxu0 0
    %707 = vmatpush1.bf16.msra.mxu0 0
    %708 = vmatprep.subr.bf16.mxu0 0
    %709 = vmatpush1.bf16.msra.mxu0 0
    %710 = vmatprep.subr.bf16.mxu0 0
    %711 = vmatpush1.bf16.msra.mxu0 0
    %712 = vmatprep.subr.bf16.mxu0 0
    %713 = vmatpush1.bf16.msra.mxu0 0
    %714 = vmatprep.subr.bf16.mxu0 0
    %715 = vmatpush1.bf16.msra.mxu0 0
    %716 = vmatprep.mubr.bf16.mxu0 0
    %717 = vmatmul.mubr.bf16.gmra.mrb[0].mxu0 %v679
    %v718 = vpop.f32.mrb[0].mxu0
    %v719 = vadd.f32 0.0, %v718
    %v720 = vpop.f32.mrb[0].mxu0
    %v721 = vpop.f32.mrb[0].mxu0
    %v722 = vpop.f32.mrb[0].mxu0
    %723 = vdwg.mxu0
    %v724 = vpack.c.bf16 %v719, %v671
    %v726 = vsel %vm293, %v724, 0
    %v729 = vsel %vm413, %v275, 0
    %731 = vmatprep.subr.bf16.mxu0 0
    %732 = vmatpush1.bf16.msra.mxu0 %v729
    %733 = vmatprep.subr.bf16.mxu0 0
    %734 = vmatpush1.bf16.msra.mxu0 0
    %735 = vmatprep.subr.bf16.mxu0 0
    %736 = vmatpush1.bf16.msra.mxu0 0
    %737 = vmatprep.subr.bf16.mxu0 0
    %738 = vmatpush1.bf16.msra.mxu0 0
    %739 = vmatprep.subr.bf16.mxu0 0
    %740 = vmatpush1.bf16.msra.mxu0 0
    %741 = vmatprep.subr.bf16.mxu0 0
    %742 = vmatpush1.bf16.msra.mxu0 0
    %743 = vmatprep.subr.bf16.mxu0 0
    %744 = vmatpush1.bf16.msra.mxu0 0
    %745 = vmatprep.subr.bf16.mxu0 0
    %746 = vmatpush1.bf16.msra.mxu0 0
    %747 = vmatprep.subr.bf16.mxu0 0
    %748 = vmatpush1.bf16.msra.mxu0 0
    %749 = vmatprep.subr.bf16.mxu0 0
    %750 = vmatpush1.bf16.msra.mxu0 0
    %751 = vmatprep.subr.bf16.mxu0 0
    %752 = vmatpush1.bf16.msra.mxu0 0
    %753 = vmatprep.subr.bf16.mxu0 0
    %754 = vmatpush1.bf16.msra.mxu0 0
    %755 = vmatprep.subr.bf16.mxu0 0
    %756 = vmatpush1.bf16.msra.mxu0 0
    %757 = vmatprep.subr.bf16.mxu0 0
    %758 = vmatpush1.bf16.msra.mxu0 0
    %759 = vmatprep.subr.bf16.mxu0 0
    %760 = vmatpush1.bf16.msra.mxu0 0
    %761 = vmatprep.subr.bf16.mxu0 0
    %762 = vmatpush1.bf16.msra.mxu0 0
    %763 = vmatprep.mubr.bf16.mxu0 0
    %764 = vmatmul.mubr.bf16.gmra.mrb[0].mxu0 %v726
    %v765 = vpop.f32.mrb[0].mxu0
    %v766 = vadd.f32 0.0, %v765
    %v767 = vpop.f32.mrb[0].mxu0
    %v768 = vpop.f32.mrb[0].mxu0
    %v769 = vadd.f32 0.0, %v768
    %v770 = vpop.f32.mrb[0].mxu0
    %771 = vdwg.mxu0
    %v773 = vsel %vm293, %v503, 0
    %v776 = vsel %vm413, %v274, 0
    %778 = vmatprep.subr.bf16.mxu0 0
    %779 = vmatpush1.bf16.msra.mxu0 %v776
    %780 = vmatprep.subr.bf16.mxu0 0
    %781 = vmatpush1.bf16.msra.mxu0 0
    %782 = vmatprep.subr.bf16.mxu0 0
    %783 = vmatpush1.bf16.msra.mxu0 0
    %784 = vmatprep.subr.bf16.mxu0 0
    %785 = vmatpush1.bf16.msra.mxu0 0
    %786 = vmatprep.subr.bf16.mxu0 0
    %787 = vmatpush1.bf16.msra.mxu0 0
    %788 = vmatprep.subr.bf16.mxu0 0
    %789 = vmatpush1.bf16.msra.mxu0 0
    %790 = vmatprep.subr.bf16.mxu0 0
    %791 = vmatpush1.bf16.msra.mxu0 0
    %792 = vmatprep.subr.bf16.mxu0 0
    %793 = vmatpush1.bf16.msra.mxu0 0
    %794 = vmatprep.subr.bf16.mxu0 0
    %795 = vmatpush1.bf16.msra.mxu0 0
    %796 = vmatprep.subr.bf16.mxu0 0
    %797 = vmatpush1.bf16.msra.mxu0 0
    %798 = vmatprep.subr.bf16.mxu0 0
    %799 = vmatpush1.bf16.msra.mxu0 0
    %800 = vmatprep.subr.bf16.mxu0 0
    %801 = vmatpush1.bf16.msra.mxu0 0
    %802 = vmatprep.subr.bf16.mxu0 0
    %803 = vmatpush1.bf16.msra.mxu0 0
    %804 = vmatprep.subr.bf16.mxu0 0
    %805 = vmatpush1.bf16.msra.mxu0 0
    %806 = vmatprep.subr.bf16.mxu0 0
    %807 = vmatpush1.bf16.msra.mxu0 0
    %808 = vmatprep.subr.bf16.mxu0 0
    %809 = vmatpush1.bf16.msra.mxu0 0
    %810 = vmatprep.mubr.bf16.mxu0 0
    %811 = vmatmul.mubr.bf16.gmra.mrb[0].mxu0 %v773
    %v812 = vpop.f32.mrb[0].mxu0
    %v813 = vadd.f32 %v766, %v812
    %v814 = vpop.f32.mrb[0].mxu0
    %v815 = vpop.f32.mrb[0].mxu0
    %v816 = vadd.f32 %v769, %v815
    %v817 = vpop.f32.mrb[0].mxu0
    %818 = vdwg.mxu0
    %819 = vrot.lane.b32.xlu0 %v281, 112
    %v820 = vpop.permute.xlu0 %819
    %821 = vrot.lane.b32.xlu0 %v286, 112
    %v822 = vpop.permute.xlu0 %821
    %v824 = vsel %vm293, %v820, 0
    %v827 = vsel %vm293, %v822, 0
    %829 = vmatprep.subr.bf16.mxu0 0
    %830 = vmatpush1.bf16.xpose.msra.mxu0 %v827
    %831 = vmatprep.subr.bf16.mxu0 0
    %832 = vmatpush1.bf16.xpose.msra.mxu0 0
    %833 = vmatprep.subr.bf16.mxu0 0
    %834 = vmatpush1.bf16.xpose.msra.mxu0 0
    %835 = vmatprep.subr.bf16.mxu0 0
    %836 = vmatpush1.bf16.xpose.msra.mxu0 0
    %837 = vmatprep.subr.bf16.mxu0 0
    %838 = vmatpush1.bf16.xpose.msra.mxu0 0
    %839 = vmatprep.subr.bf16.mxu0 0
    %840 = vmatpush1.bf16.xpose.msra.mxu0 0
    %841 = vmatprep.subr.bf16.mxu0 0
    %842 = vmatpush1.bf16.xpose.msra.mxu0 0
    %843 = vmatprep.subr.bf16.mxu0 0
    %844 = vmatpush1.bf16.xpose.msra.mxu0 0
    %845 = vmatprep.subr.bf16.mxu0 0
    %846 = vmatpush1.bf16.xpose.msra.mxu0 0
    %847 = vmatprep.subr.bf16.mxu0 0
    %848 = vmatpush1.bf16.xpose.msra.mxu0 0
    %849 = vmatprep.subr.bf16.mxu0 0
    %850 = vmatpush1.bf16.xpose.msra.mxu0 0
    %851 = vmatprep.subr.bf16.mxu0 0
    %852 = vmatpush1.bf16.xpose.msra.mxu0 0
    %853 = vmatprep.subr.bf16.mxu0 0
    %854 = vmatpush1.bf16.xpose.msra.mxu0 0
    %855 = vmatprep.subr.bf16.mxu0 0
    %856 = vmatpush1.bf16.xpose.msra.mxu0 0
    %857 = vmatprep.subr.bf16.mxu0 0
    %858 = vmatpush1.bf16.xpose.msra.mxu0 0
    %859 = vmatprep.subr.bf16.mxu0 0
    %860 = vmatpush1.bf16.xpose.msra.mxu0 0
    %861 = vmatprep.mubr.bf16.mxu0 0
    %862 = vmatmul.mubr.bf16.gmra.mrb[0].mxu0 %v824
    %v863 = vpop.f32.mrb[0].mxu0
    %v864 = vadd.f32 0.0, %v863
    %v865 = vpop.f32.mrb[0].mxu0
    %v866 = vpop.f32.mrb[0].mxu0
    %v867 = vpop.f32.mrb[0].mxu0
    %868 = vdwg.mxu0
    %869 = vrot.lane.b32.xlu0 %v282, 112
    %v870 = vpop.permute.xlu0 %869
    %871 = vrot.lane.b32.xlu0 %v287, 112
    %v872 = vpop.permute.xlu0 %871
    %v874 = vsel %vm293, %v870, 0
    %v877 = vsel %vm293, %v872, 0
    %879 = vmatprep.subr.bf16.mxu0 0
    %880 = vmatpush1.bf16.xpose.msra.mxu0 %v877
    %881 = vmatprep.subr.bf16.mxu0 0
    %882 = vmatpush1.bf16.xpose.msra.mxu0 0
    %883 = vmatprep.subr.bf16.mxu0 0
    %884 = vmatpush1.bf16.xpose.msra.mxu0 0
    %885 = vmatprep.subr.bf16.mxu0 0
    %886 = vmatpush1.bf16.xpose.msra.mxu0 0
    %887 = vmatprep.subr.bf16.mxu0 0
    %888 = vmatpush1.bf16.xpose.msra.mxu0 0
    %889 = vmatprep.subr.bf16.mxu0 0
    %890 = vmatpush1.bf16.xpose.msra.mxu0 0
    %891 = vmatprep.subr.bf16.mxu0 0
    %892 = vmatpush1.bf16.xpose.msra.mxu0 0
    %893 = vmatprep.subr.bf16.mxu0 0
    %894 = vmatpush1.bf16.xpose.msra.mxu0 0
    %895 = vmatprep.subr.bf16.mxu0 0
    %896 = vmatpush1.bf16.xpose.msra.mxu0 0
    %897 = vmatprep.subr.bf16.mxu0 0
    %898 = vmatpush1.bf16.xpose.msra.mxu0 0
    %899 = vmatprep.subr.bf16.mxu0 0
    %900 = vmatpush1.bf16.xpose.msra.mxu0 0
    %901 = vmatprep.subr.bf16.mxu0 0
    %902 = vmatpush1.bf16.xpose.msra.mxu0 0
    %903 = vmatprep.subr.bf16.mxu0 0
    %904 = vmatpush1.bf16.xpose.msra.mxu0 0
    %905 = vmatprep.subr.bf16.mxu0 0
    %906 = vmatpush1.bf16.xpose.msra.mxu0 0
    %907 = vmatprep.subr.bf16.mxu0 0
    %908 = vmatpush1.bf16.xpose.msra.mxu0 0
    %909 = vmatprep.subr.bf16.mxu0 0
    %910 = vmatpush1.bf16.xpose.msra.mxu0 0
    %911 = vmatprep.mubr.bf16.mxu0 0
    %912 = vmatmul.mubr.bf16.gmra.mrb[0].mxu0 %v874
    %v913 = vpop.f32.mrb[0].mxu0
    %v914 = vadd.f32 0.0, %v913
    %v915 = vpop.f32.mrb[0].mxu0
    %v916 = vpop.f32.mrb[0].mxu0
    %v917 = vpop.f32.mrb[0].mxu0
    %918 = vdwg.mxu0
    %v919 = vsel %vm293, %v864, -inf
    %920 = vmax.xlane.f32.xlu0 %v919
    %v921 = vpop.xlane.xlu0 %920
    %v922 = vsel %vm293, %v914, -inf
    %923 = vmax.xlane.f32.xlu0 %v922
    %v924 = vpop.xlane.xlu0 %923
    %v925 = vsub.f32 %v864, %v921
    %v926 = vsub.f32 %v914, %v924
    %v927 = vmul.f32 %v925, 1.442695
    %v928 = vpow.pop %v927
    %v929 = vmul.f32 %v926, 1.442695
    %v930 = vpow.pop %v929
    %v931 = vsel %vm293, %v928, 0.0
    %932 = vadd.xlane.f32.xlu0 %v931
    %v933 = vpop.xlane.xlu0 %932
    %v934 = vsel %vm293, %v930, 0.0
    %935 = vadd.xlane.f32.xlu0 %v934
    %v936 = vpop.xlane.xlu0 %935
    %v937 = vrcp.pop %v933
    %v938 = vrcp.pop %v936
    %v939 = vmul.f32 %v928, %v937
    %v940 = vmul.f32 %v930, %v938
    %v941 = vpack.c.bf16 %v939, %v939
    %v942 = vpack.c.bf16 %v940, %v940
    %943 = vrot.lane.b32.xlu0 %v291, 112
    %v944 = vpop.permute.xlu0 %943
    %v946 = vsel %vm293, %v941, 0
    %v949 = vsel %vm413, %v944, 0
    %951 = vmatprep.subr.bf16.mxu0 0
    %952 = vmatpush1.bf16.msra.mxu0 %v949
    %953 = vmatprep.subr.bf16.mxu0 0
    %954 = vmatpush1.bf16.msra.mxu0 0
    %955 = vmatprep.subr.bf16.mxu0 0
    %956 = vmatpush1.bf16.msra.mxu0 0
    %957 = vmatprep.subr.bf16.mxu0 0
    %958 = vmatpush1.bf16.msra.mxu0 0
    %959 = vmatprep.subr.bf16.mxu0 0
    %960 = vmatpush1.bf16.msra.mxu0 0
    %961 = vmatprep.subr.bf16.mxu0 0
    %962 = vmatpush1.bf16.msra.mxu0 0
    %963 = vmatprep.subr.bf16.mxu0 0
    %964 = vmatpush1.bf16.msra.mxu0 0
    %965 = vmatprep.subr.bf16.mxu0 0
    %966 = vmatpush1.bf16.msra.mxu0 0
    %967 = vmatprep.subr.bf16.mxu0 0
    %968 = vmatpush1.bf16.msra.mxu0 0
    %969 = vmatprep.subr.bf16.mxu0 0
    %970 = vmatpush1.bf16.msra.mxu0 0
    %971 = vmatprep.subr.bf16.mxu0 0
    %972 = vmatpush1.bf16.msra.mxu0 0
    %973 = vmatprep.subr.bf16.mxu0 0
    %974 = vmatpush1.bf16.msra.mxu0 0
    %975 = vmatprep.subr.bf16.mxu0 0
    %976 = vmatpush1.bf16.msra.mxu0 0
    %977 = vmatprep.subr.bf16.mxu0 0
    %978 = vmatpush1.bf16.msra.mxu0 0
    %979 = vmatprep.subr.bf16.mxu0 0
    %980 = vmatpush1.bf16.msra.mxu0 0
    %981 = vmatprep.subr.bf16.mxu0 0
    %982 = vmatpush1.bf16.msra.mxu0 0
    %983 = vmatprep.mubr.bf16.mxu0 0
    %984 = vmatmul.mubr.bf16.gmra.mrb[0].mxu0 %v946
    %v985 = vpop.f32.mrb[0].mxu0
    %v986 = vadd.f32 0.0, %v985
    %v987 = vpop.f32.mrb[0].mxu0
    %v988 = vpop.f32.mrb[0].mxu0
    %v989 = vpop.f32.mrb[0].mxu0
    %990 = vdwg.mxu0
    %991 = vrot.lane.b32.xlu0 %v292, 112
    %v992 = vpop.permute.xlu0 %991
    %v994 = vsel %vm293, %v942, 0
    %v997 = vsel %vm413, %v992, 0
    %999 = vmatprep.subr.bf16.mxu0 0
    %1000 = vmatpush1.bf16.msra.mxu0 %v997
    %1001 = vmatprep.subr.bf16.mxu0 0
    %1002 = vmatpush1.bf16.msra.mxu0 0
    %1003 = vmatprep.subr.bf16.mxu0 0
    %1004 = vmatpush1.bf16.msra.mxu0 0
    %1005 = vmatprep.subr.bf16.mxu0 0
    %1006 = vmatpush1.bf16.msra.mxu0 0
    %1007 = vmatprep.subr.bf16.mxu0 0
    %1008 = vmatpush1.bf16.msra.mxu0 0
    %1009 = vmatprep.subr.bf16.mxu0 0
    %1010 = vmatpush1.bf16.msra.mxu0 0
    %1011 = vmatprep.subr.bf16.mxu0 0
    %1012 = vmatpush1.bf16.msra.mxu0 0
    %1013 = vmatprep.subr.bf16.mxu0 0
    %1014 = vmatpush1.bf16.msra.mxu0 0
    %1015 = vmatprep.subr.bf16.mxu0 0
    %1016 = vmatpush1.bf16.msra.mxu0 0
    %1017 = vmatprep.subr.bf16.mxu0 0
    %1018 = vmatpush1.bf16.msra.mxu0 0
    %1019 = vmatprep.subr.bf16.mxu0 0
    %1020 = vmatpush1.bf16.msra.mxu0 0
    %1021 = vmatprep.subr.bf16.mxu0 0
    %1022 = vmatpush1.bf16.msra.mxu0 0
    %1023 = vmatprep.subr.bf16.mxu0 0
    %1024 = vmatpush1.bf16.msra.mxu0 0
    %1025 = vmatprep.subr.bf16.mxu0 0
    %1026 = vmatpush1.bf16.msra.mxu0 0
    %1027 = vmatprep.subr.bf16.mxu0 0
    %1028 = vmatpush1.bf16.msra.mxu0 0
    %1029 = vmatprep.subr.bf16.mxu0 0
    %1030 = vmatpush1.bf16.msra.mxu0 0
    %1031 = vmatprep.mubr.bf16.mxu0 0
    %1032 = vmatmul.mubr.bf16.gmra.mrb[0].mxu0 %v994
    %v1033 = vpop.f32.mrb[0].mxu0
    %v1034 = vadd.f32 0.0, %v1033
    %v1035 = vpop.f32.mrb[0].mxu0
    %v1036 = vpop.f32.mrb[0].mxu0
    %v1037 = vpop.f32.mrb[0].mxu0
    %1038 = vdwg.mxu0
    %v1039 = vpack.c.bf16 %v1034, %v986
    %v1041 = vsel %vm293, %v1039, 0
    %v1044 = vsel %vm413, %v276, 0
    %1046 = vmatprep.subr.bf16.mxu0 0
    %1047 = vmatpush1.bf16.msra.mxu0 %v1044
    %1048 = vmatprep.subr.bf16.mxu0 0
    %1049 = vmatpush1.bf16.msra.mxu0 0
    %1050 = vmatprep.subr.bf16.mxu0 0
    %1051 = vmatpush1.bf16.msra.mxu0 0
    %1052 = vmatprep.subr.bf16.mxu0 0
    %1053 = vmatpush1.bf16.msra.mxu0 0
    %1054 = vmatprep.subr.bf16.mxu0 0
    %1055 = vmatpush1.bf16.msra.mxu0 0
    %1056 = vmatprep.subr.bf16.mxu0 0
    %1057 = vmatpush1.bf16.msra.mxu0 0
    %1058 = vmatprep.subr.bf16.mxu0 0
    %1059 = vmatpush1.bf16.msra.mxu0 0
    %1060 = vmatprep.subr.bf16.mxu0 0
    %1061 = vmatpush1.bf16.msra.mxu0 0
    %1062 = vmatprep.subr.bf16.mxu0 0
    %1063 = vmatpush1.bf16.msra.mxu0 0
    %1064 = vmatprep.subr.bf16.mxu0 0
    %1065 = vmatpush1.bf16.msra.mxu0 0
    %1066 = vmatprep.subr.bf16.mxu0 0
    %1067 = vmatpush1.bf16.msra.mxu0 0
    %1068 = vmatprep.subr.bf16.mxu0 0
    %1069 = vmatpush1.bf16.msra.mxu0 0
    %1070 = vmatprep.subr.bf16.mxu0 0
    %1071 = vmatpush1.bf16.msra.mxu0 0
    %1072 = vmatprep.subr.bf16.mxu0 0
    %1073 = vmatpush1.bf16.msra.mxu0 0
    %1074 = vmatprep.subr.bf16.mxu0 0
    %1075 = vmatpush1.bf16.msra.mxu0 0
    %1076 = vmatprep.subr.bf16.mxu0 0
    %1077 = vmatpush1.bf16.msra.mxu0 0
    %1078 = vmatprep.mubr.bf16.mxu0 0
    %1079 = vmatmul.mubr.bf16.gmra.mrb[0].mxu0 %v1041
    %v1080 = vpop.f32.mrb[0].mxu0
    %v1081 = vadd.f32 0.0, %v1080
    %v1082 = vpop.f32.mrb[0].mxu0
    %v1083 = vpop.f32.mrb[0].mxu0
    %v1084 = vadd.f32 0.0, %v1083
    %v1085 = vpop.f32.mrb[0].mxu0
    %1086 = vdwg.mxu0
    %v1087 = vadd.f32 %v813, %v1081
    %v1088 = vadd.f32 %v816, %v1084
    %1089 = vrot.lane.b32.xlu0 %v281, 104
    %v1090 = vpop.permute.xlu0 %1089
    %1091 = vrot.lane.b32.xlu0 %v286, 104
    %v1092 = vpop.permute.xlu0 %1091
    %v1094 = vsel %vm293, %v1090, 0
    %v1097 = vsel %vm293, %v1092, 0
    %1099 = vmatprep.subr.bf16.mxu0 0
    %1100 = vmatpush1.bf16.xpose.msra.mxu0 %v1097
    %1101 = vmatprep.subr.bf16.mxu0 0
    %1102 = vmatpush1.bf16.xpose.msra.mxu0 0
    %1103 = vmatprep.subr.bf16.mxu0 0
    %1104 = vmatpush1.bf16.xpose.msra.mxu0 0
    %1105 = vmatprep.subr.bf16.mxu0 0
    %1106 = vmatpush1.bf16.xpose.msra.mxu0 0
    %1107 = vmatprep.subr.bf16.mxu0 0
    %1108 = vmatpush1.bf16.xpose.msra.mxu0 0
    %1109 = vmatprep.subr.bf16.mxu0 0
    %1110 = vmatpush1.bf16.xpose.msra.mxu0 0
    %1111 = vmatprep.subr.bf16.mxu0 0
    %1112 = vmatpush1.bf16.xpose.msra.mxu0 0
    %1113 = vmatprep.subr.bf16.mxu0 0
    %1114 = vmatpush1.bf16.xpose.msra.mxu0 0
    %1115 = vmatprep.subr.bf16.mxu0 0
    %1116 = vmatpush1.bf16.xpose.msra.mxu0 0
    %1117 = vmatprep.subr.bf16.mxu0 0
    %1118 = vmatpush1.bf16.xpose.msra.mxu0 0
    %1119 = vmatprep.subr.bf16.mxu0 0
    %1120 = vmatpush1.bf16.xpose.msra.mxu0 0
    %1121 = vmatprep.subr.bf16.mxu0 0
    %1122 = vmatpush1.bf16.xpose.msra.mxu0 0
    %1123 = vmatprep.subr.bf16.mxu0 0
    %1124 = vmatpush1.bf16.xpose.msra.mxu0 0
    %1125 = vmatprep.subr.bf16.mxu0 0
    %1126 = vmatpush1.bf16.xpose.msra.mxu0 0
    %1127 = vmatprep.subr.bf16.mxu0 0
    %1128 = vmatpush1.bf16.xpose.msra.mxu0 0
    %1129 = vmatprep.subr.bf16.mxu0 0
    %1130 = vmatpush1.bf16.xpose.msra.mxu0 0
    %1131 = vmatprep.mubr.bf16.mxu0 0
    %1132 = vmatmul.mubr.bf16.gmra.mrb[0].mxu0 %v1094
    %v1133 = vpop.f32.mrb[0].mxu0
    %v1134 = vadd.f32 0.0, %v1133
    %v1135 = vpop.f32.mrb[0].mxu0
    %v1136 = vpop.f32.mrb[0].mxu0
    %v1137 = vpop.f32.mrb[0].mxu0
    %1138 = vdwg.mxu0
    %1139 = vrot.lane.b32.xlu0 %v282, 104
    %v1140 = vpop.permute.xlu0 %1139
    %1141 = vrot.lane.b32.xlu0 %v287, 104
    %v1142 = vpop.permute.xlu0 %1141
    %v1144 = vsel %vm293, %v1140, 0
    %v1147 = vsel %vm293, %v1142, 0
    %1149 = vmatprep.subr.bf16.mxu0 0
    %1150 = vmatpush1.bf16.xpose.msra.mxu0 %v1147
    %1151 = vmatprep.subr.bf16.mxu0 0
    %1152 = vmatpush1.bf16.xpose.msra.mxu0 0
    %1153 = vmatprep.subr.bf16.mxu0 0
    %1154 = vmatpush1.bf16.xpose.msra.mxu0 0
    %1155 = vmatprep.subr.bf16.mxu0 0
    %1156 = vmatpush1.bf16.xpose.msra.mxu0 0
    %1157 = vmatprep.subr.bf16.mxu0 0
    %1158 = vmatpush1.bf16.xpose.msra.mxu0 0
    %1159 = vmatprep.subr.bf16.mxu0 0
    %1160 = vmatpush1.bf16.xpose.msra.mxu0 0
    %1161 = vmatprep.subr.bf16.mxu0 0
    %1162 = vmatpush1.bf16.xpose.msra.mxu0 0
    %1163 = vmatprep.subr.bf16.mxu0 0
    %1164 = vmatpush1.bf16.xpose.msra.mxu0 0
    %1165 = vmatprep.subr.bf16.mxu0 0
    %1166 = vmatpush1.bf16.xpose.msra.mxu0 0
    %1167 = vmatprep.subr.bf16.mxu0 0
    %1168 = vmatpush1.bf16.xpose.msra.mxu0 0
    %1169 = vmatprep.subr.bf16.mxu0 0
    %1170 = vmatpush1.bf16.xpose.msra.mxu0 0
    %1171 = vmatprep.subr.bf16.mxu0 0
    %1172 = vmatpush1.bf16.xpose.msra.mxu0 0
    %1173 = vmatprep.subr.bf16.mxu0 0
    %1174 = vmatpush1.bf16.xpose.msra.mxu0 0
    %1175 = vmatprep.subr.bf16.mxu0 0
    %1176 = vmatpush1.bf16.xpose.msra.mxu0 0
    %1177 = vmatprep.subr.bf16.mxu0 0
    %1178 = vmatpush1.bf16.xpose.msra.mxu0 0
    %1179 = vmatprep.subr.bf16.mxu0 0
    %1180 = vmatpush1.bf16.xpose.msra.mxu0 0
    %1181 = vmatprep.mubr.bf16.mxu0 0
    %1182 = vmatmul.mubr.bf16.gmra.mrb[0].mxu0 %v1144
    %v1183 = vpop.f32.mrb[0].mxu0
    %v1184 = vadd.f32 0.0, %v1183
    %v1185 = vpop.f32.mrb[0].mxu0
    %v1186 = vpop.f32.mrb[0].mxu0
    %v1187 = vpop.f32.mrb[0].mxu0
    %1188 = vdwg.mxu0
    %v1189 = vsel %vm293, %v1134, -inf
    %1190 = vmax.xlane.f32.xlu0 %v1189
    %v1191 = vpop.xlane.xlu0 %1190
    %v1192 = vsel %vm293, %v1184, -inf
    %1193 = vmax.xlane.f32.xlu0 %v1192
    %v1194 = vpop.xlane.xlu0 %1193
    %v1195 = vsub.f32 %v1134, %v1191
    %v1196 = vsub.f32 %v1184, %v1194
    %v1197 = vmul.f32 %v1195, 1.442695
    %v1198 = vpow.pop %v1197
    %v1199 = vmul.f32 %v1196, 1.442695
    %v1200 = vpow.pop %v1199
    %v1201 = vsel %vm293, %v1198, 0.0
    %1202 = vadd.xlane.f32.xlu0 %v1201
    %v1203 = vpop.xlane.xlu0 %1202
    %v1204 = vsel %vm293, %v1200, 0.0
    %1205 = vadd.xlane.f32.xlu0 %v1204
    %v1206 = vpop.xlane.xlu0 %1205
    %v1207 = vrcp.pop %v1203
    %v1208 = vrcp.pop %v1206
    %v1209 = vmul.f32 %v1198, %v1207
    %v1210 = vmul.f32 %v1200, %v1208
    %v1211 = vpack.c.bf16 %v1209, %v1209
    %v1212 = vpack.c.bf16 %v1210, %v1210
    %1213 = vrot.lane.b32.xlu0 %v291, 104
    %v1214 = vpop.permute.xlu0 %1213
    %v1216 = vsel %vm293, %v1211, 0
    %v1219 = vsel %vm413, %v1214, 0
    %1221 = vmatprep.subr.bf16.mxu0 0
    %1222 = vmatpush1.bf16.msra.mxu0 %v1219
    %1223 = vmatprep.subr.bf16.mxu0 0
    %1224 = vmatpush1.bf16.msra.mxu0 0
    %1225 = vmatprep.subr.bf16.mxu0 0
    %1226 = vmatpush1.bf16.msra.mxu0 0
    %1227 = vmatprep.subr.bf16.mxu0 0
    %1228 = vmatpush1.bf16.msra.mxu0 0
    %1229 = vmatprep.subr.bf16.mxu0 0
    %1230 = vmatpush1.bf16.msra.mxu0 0
    %1231 = vmatprep.subr.bf16.mxu0 0
    %1232 = vmatpush1.bf16.msra.mxu0 0
    %1233 = vmatprep.subr.bf16.mxu0 0
    %1234 = vmatpush1.bf16.msra.mxu0 0
    %1235 = vmatprep.subr.bf16.mxu0 0
    %1236 = vmatpush1.bf16.msra.mxu0 0
    %1237 = vmatprep.subr.bf16.mxu0 0
    %1238 = vmatpush1.bf16.msra.mxu0 0
    %1239 = vmatprep.subr.bf16.mxu0 0
    %1240 = vmatpush1.bf16.msra.mxu0 0
    %1241 = vmatprep.subr.bf16.mxu0 0
    %1242 = vmatpush1.bf16.msra.mxu0 0
    %1243 = vmatprep.subr.bf16.mxu0 0
    %1244 = vmatpush1.bf16.msra.mxu0 0
    %1245 = vmatprep.subr.bf16.mxu0 0
    %1246 = vmatpush1.bf16.msra.mxu0 0
    %1247 = vmatprep.subr.bf16.mxu0 0
    %1248 = vmatpush1.bf16.msra.mxu0 0
    %1249 = vmatprep.subr.bf16.mxu0 0
    %1250 = vmatpush1.bf16.msra.mxu0 0
    %1251 = vmatprep.subr.bf16.mxu0 0
    %1252 = vmatpush1.bf16.msra.mxu0 0
    %1253 = vmatprep.mubr.bf16.mxu0 0
    %1254 = vmatmul.mubr.bf16.gmra.mrb[0].mxu0 %v1216
    %v1255 = vpop.f32.mrb[0].mxu0
    %v1256 = vadd.f32 0.0, %v1255
    %v1257 = vpop.f32.mrb[0].mxu0
    %v1258 = vpop.f32.mrb[0].mxu0
    %v1259 = vpop.f32.mrb[0].mxu0
    %1260 = vdwg.mxu0
    %1261 = vrot.lane.b32.xlu0 %v292, 104
    %v1262 = vpop.permute.xlu0 %1261
    %v1264 = vsel %vm293, %v1212, 0
    %v1267 = vsel %vm413, %v1262, 0
    %1269 = vmatprep.subr.bf16.mxu0 0
    %1270 = vmatpush1.bf16.msra.mxu0 %v1267
    %1271 = vmatprep.subr.bf16.mxu0 0
    %1272 = vmatpush1.bf16.msra.mxu0 0
    %1273 = vmatprep.subr.bf16.mxu0 0
    %1274 = vmatpush1.bf16.msra.mxu0 0
    %1275 = vmatprep.subr.bf16.mxu0 0
    %1276 = vmatpush1.bf16.msra.mxu0 0
    %1277 = vmatprep.subr.bf16.mxu0 0
    %1278 = vmatpush1.bf16.msra.mxu0 0
    %1279 = vmatprep.subr.bf16.mxu0 0
    %1280 = vmatpush1.bf16.msra.mxu0 0
    %1281 = vmatprep.subr.bf16.mxu0 0
    %1282 = vmatpush1.bf16.msra.mxu0 0
    %1283 = vmatprep.subr.bf16.mxu0 0
    %1284 = vmatpush1.bf16.msra.mxu0 0
    %1285 = vmatprep.subr.bf16.mxu0 0
    %1286 = vmatpush1.bf16.msra.mxu0 0
    %1287 = vmatprep.subr.bf16.mxu0 0
    %1288 = vmatpush1.bf16.msra.mxu0 0
    %1289 = vmatprep.subr.bf16.mxu0 0
    %1290 = vmatpush1.bf16.msra.mxu0 0
    %1291 = vmatprep.subr.bf16.mxu0 0
    %1292 = vmatpush1.bf16.msra.mxu0 0
    %1293 = vmatprep.subr.bf16.mxu0 0
    %1294 = vmatpush1.bf16.msra.mxu0 0
    %1295 = vmatprep.subr.bf16.mxu0 0
    %1296 = vmatpush1.bf16.msra.mxu0 0
    %1297 = vmatprep.subr.bf16.mxu0 0
    %1298 = vmatpush1.bf16.msra.mxu0 0
    %1299 = vmatprep.subr.bf16.mxu0 0
    %1300 = vmatpush1.bf16.msra.mxu0 0
    %1301 = vmatprep.mubr.bf16.mxu0 0
    %1302 = vmatmul.mubr.bf16.gmra.mrb[0].mxu0 %v1264
    %v1303 = vpop.f32.mrb[0].mxu0
    %v1304 = vadd.f32 0.0, %v1303
    %v1305 = vpop.f32.mrb[0].mxu0
    %v1306 = vpop.f32.mrb[0].mxu0
    %v1307 = vpop.f32.mrb[0].mxu0
    %1308 = vdwg.mxu0
    %v1309 = vpack.c.bf16 %v1304, %v1256
    %v1311 = vsel %vm293, %v1309, 0
    %v1314 = vsel %vm413, %v277, 0
    %1316 = vmatprep.subr.bf16.mxu0 0
    %1317 = vmatpush1.bf16.msra.mxu0 %v1314
    %1318 = vmatprep.subr.bf16.mxu0 0
    %1319 = vmatpush1.bf16.msra.mxu0 0
    %1320 = vmatprep.subr.bf16.mxu0 0
    %1321 = vmatpush1.bf16.msra.mxu0 0
    %1322 = vmatprep.subr.bf16.mxu0 0
    %1323 = vmatpush1.bf16.msra.mxu0 0
    %1324 = vmatprep.subr.bf16.mxu0 0
    %1325 = vmatpush1.bf16.msra.mxu0 0
    %1326 = vmatprep.subr.bf16.mxu0 0
    %1327 = vmatpush1.bf16.msra.mxu0 0
    %1328 = vmatprep.subr.bf16.mxu0 0
    %1329 = vmatpush1.bf16.msra.mxu0 0
    %1330 = vmatprep.subr.bf16.mxu0 0
    %1331 = vmatpush1.bf16.msra.mxu0 0
    %1332 = vmatprep.subr.bf16.mxu0 0
    %1333 = vmatpush1.bf16.msra.mxu0 0
    %1334 = vmatprep.subr.bf16.mxu0 0
    %1335 = vmatpush1.bf16.msra.mxu0 0
    %1336 = vmatprep.subr.bf16.mxu0 0
    %1337 = vmatpush1.bf16.msra.mxu0 0
    %1338 = vmatprep.subr.bf16.mxu0 0
    %1339 = vmatpush1.bf16.msra.mxu0 0
    %1340 = vmatprep.subr.bf16.mxu0 0
    %1341 = vmatpush1.bf16.msra.mxu0 0
    %1342 = vmatprep.subr.bf16.mxu0 0
    %1343 = vmatpush1.bf16.msra.mxu0 0
    %1344 = vmatprep.subr.bf16.mxu0 0
    %1345 = vmatpush1.bf16.msra.mxu0 0
    %1346 = vmatprep.subr.bf16.mxu0 0
    %1347 = vmatpush1.bf16.msra.mxu0 0
    %1348 = vmatprep.mubr.bf16.mxu0 0
    %1349 = vmatmul.mubr.bf16.gmra.mrb[0].mxu0 %v1311
    %v1350 = vpop.f32.mrb[0].mxu0
    %v1351 = vadd.f32 0.0, %v1350
    %v1352 = vpop.f32.mrb[0].mxu0
    %v1353 = vpop.f32.mrb[0].mxu0
    %v1354 = vadd.f32 0.0, %v1353
    %v1355 = vpop.f32.mrb[0].mxu0
    %1356 = vdwg.mxu0
    %v1357 = vadd.f32 %v1087, %v1351
    %v1358 = vadd.f32 %v1088, %v1354
    %v1359 = vld [vmem:[%s5] sm:$0x1]
    %v1361 = vlaneseq
    %v1362 = vshrl.u32 %v1361, 7
    %v1363 = vsub.s32 0, %v1362
    %v1364 = vrot.slane %v1359, %v1363
    %v1366 = vadd.f32 %v1357, %v1364
    %v1367 = vadd.f32 %v1358, %v1364
    %1368 = vst.msk [vmem:[#allocation11] sm:$0xff] %vm112, %v1366
    %1369 = vst.msk [vmem:[#allocation11 + $0x8] sm:$0xff] %vm112, %v1367
    // Predicated region
    $region46: #{tpu_custom_call.1} parent=1 // pred_check
      _
    $region47: #{tpu_custom_call.1} parent=1 // pred_check_branch
      %1371 = sbr.rel (0) target = $region49
    $region48: #{tpu_custom_call.1} parent=1 // pred_region
      %s1373 = ssub.s32 256, 256
      %1374 = vsyncadd [#allocation4], %s1373
      %s1375 = sshll.u32 [#allocation11], 4
      %s1376 = int_to_ptr.vmem [resolvable:$true] %s1375
      %1381 = dma.vmem_to_hbm [thread:$0]  %s1376, 256, %s6, [#allocation4], 128, 128, 8
    $region49: #{tpu_custom_call.1} parent=1 // pred_fallthru
      _
    // Predicated region
    $region50: #{tpu_custom_call.1} parent=1 // pred_check
      _
    $region51: #{tpu_custom_call.1} parent=1 // pred_check_branch
      %1383 = sbr.rel (0) target = $region53
    $region52: #{tpu_custom_call.1} parent=1 // pred_region
      %1384 = dma.done [#allocation4], 256
    $region53: #{tpu_custom_call.1} parent=1 // pred_fallthru
      _
    %1385 = vsyncpa [#allocation3], 1
    %1386 = vsyncpa [#allocation6], 1
    %1387 = vsyncpa [#allocation9], 1
    %1388 = vsyncpa [#allocation4], 1

</llo_original>
